<compile_context>
chip_gen: v7x
topology: tpu7x:2x2x1
jax: 0.10.0
libtpu: 0.0.40
codegen_flags: <defaults>
</compile_context>

<pallas_src>
import functools

import jax
import jax.numpy as jnp
from jax.experimental import pallas as pl
from jax.experimental.pallas import tpu as pltpu

EMBED = 768     # P3Encoder embedding dim
HIDDEN = 512    # classifier hidden dim
PATCH = 4       # p3_encoder.downsampling_factor
LANE = 128


def _round_up(n, m):
    return (n + m - 1) // m * m


def _nbytes(a):
    return a.size * a.dtype.itemsize


def _choose_row_tile(C, H, W, target_bytes=2 * 1024 * 1024):
    """Row-tile (2nd-to-last block dim) for x: a multiple of 8 that divides H
    (or the full H), sized toward ~2 MiB f32 slabs so the ~0.35 us grid-step
    overhead is amortized while (block x 2 buffers + scratch) stays far under
    v7x's 64 MiB VMEM."""
    if H % 8 != 0:
        return H                              # full-dim block is always legal
    best = 8
    for t in range(8, H + 1, 8):
        if H % t == 0 and C * t * W * 4 <= target_bytes:
            best = t
    return best


# ----------------------------------------------------------------------------
# Kernel 1: HBM-roofline reduction of x (native NCHW, f32).
#   x:   (B, C, H, W)  f32   [block (1, C, trh, W), grid (b, m)]
#   q:   (B, C, p, W)  f32   [block (1, C, p, W), resident across m]
#   acc: (C, trh, W)   f32   VMEM scratch (per-batch running row-tile sum)
# Per step: acc += x-block (pure VPU, full-vreg adds).  At m==last the trh
# accumulated rows are folded mod p with static contiguous sublane slices.
# ----------------------------------------------------------------------------
def _pool_rows_kernel(x_ref, q_ref, acc_ref, *, p):
    m = pl.program_id(1)
    trh = acc_ref.shape[1]

    @pl.when(m == 0)
    def _init():
        acc_ref[...] = jnp.zeros_like(acc_ref)

    acc_ref[...] += x_ref[0].astype(jnp.float32)

    @pl.when(m == pl.num_programs(1) - 1)
    def _finalize():
        a = acc_ref[...]                               # (C, trh, W)
        rf = a[:, 0:p, :]
        for j in range(1, trh // p):                   # static unroll
            rf = rf + a[:, j * p:(j + 1) * p, :]
        q_ref[0] = rf                                  # (C, p, W)


def _pooled_rowfold(x, *, p, trh):
    B, C, H, W = x.shape
    n_m = H // trh
    kernel = functools.partial(_pool_rows_kernel, p=p)
    flops = 2 * B * C * H * W                          # adds only
    bytes_accessed = _nbytes(x) + B * C * p * W * 4
    return pl.pallas_call(
        kernel,
        out_shape=jax.ShapeDtypeStruct((B, C, p, W), jnp.float32),
        grid_spec=pltpu.PrefetchScalarGridSpec(
            num_scalar_prefetch=0,
            grid=(B, n_m),                             # batch parallel, rows reduce
            in_specs=[pl.BlockSpec((1, C, trh, W), lambda b, m: (b, 0, m, 0))],
            out_specs=pl.BlockSpec((1, C, p, W), lambda b, m: (b, 0, 0, 0)),
            scratch_shapes=[pltpu.VMEM((C, trh, W), jnp.float32)],
        ),
        compiler_params=pltpu.CompilerParams(
            dimension_semantics=("parallel", "arbitrary"),
            vmem_limit_bytes=32 * 1024 * 1024,         # usage is ~MBs; safe on v5e/v6e/v7x
        ),
        cost_estimate=pl.CostEstimate(
            flops=flops, transcendentals=0, bytes_accessed=bytes_accessed),
    )(x)


# ----------------------------------------------------------------------------
# Kernel 2: batched pooled patch-embed + classifier head, all rows at once.
#   q:    (Bp, CKp)  f32   [block (tb, CKp)]
#   wexp: (CKp, E)   f32   (patch-embed weight with the gw column-fold and the
#                           1/N mean folded in)
#   bp/b1/b2 biases, w1 (E, 512), w2 (512, Cp)
#   out:  (Bp, Cp)   f32
# All matmuls stay f32 (this kernel is negligible work; accuracy over speed).
# Weights use constant index maps; they are tiny, so default double-buffering
# is fine (pl.Buffered(1) would only save ~a few MiB if ever VMEM-tight).
# ----------------------------------------------------------------------------
def _head_kernel(q_ref, wexp_ref, bp_ref, w1_ref, b1_ref, w2_ref, b2_ref,
                 out_ref):
    pooled = jnp.dot(q_ref[...], wexp_ref[...],
                     preferred_element_type=jnp.float32) + bp_ref[...]
    h = jnp.dot(pooled, w1_ref[...], preferred_element_type=jnp.float32)
    h = jnp.maximum(h + b1_ref[...], 0.0)              # ReLU
    # Dropout(p=0.25) is identity at inference time.
    logits = jnp.dot(h, w2_ref[...], preferred_element_type=jnp.float32)
    out_ref[...] = (logits + b2_ref[...]).astype(out_ref.dtype)


def _head_forward(qflat, wexp, bp, w1, b1, w2, b2, *, tb):
    Bp, CKp = qflat.shape
    E = wexp.shape[1]
    Hd = w1.shape[1]
    Cp = w2.shape[1]
    flops = 2 * Bp * (CKp * E + E * Hd + Hd * Cp)
    bytes_accessed = (sum(map(_nbytes, (qflat, wexp, bp, w1, b1, w2, b2)))
                      + Bp * Cp * 4)
    return pl.pallas_call(
        _head_kernel,
        out_shape=jax.ShapeDtypeStruct((Bp, Cp), jnp.float32),
        grid_spec=pltpu.PrefetchScalarGridSpec(
            num_scalar_prefetch=0,
            grid=(Bp // tb,),
            in_specs=[
                pl.BlockSpec((tb, CKp), lambda i: (i, 0)),
                pl.BlockSpec((CKp, E), lambda i: (0, 0)),
                pl.BlockSpec((1, E), lambda i: (0, 0)),
                pl.BlockSpec((E, Hd), lambda i: (0, 0)),
                pl.BlockSpec((1, Hd), lambda i: (0, 0)),
                pl.BlockSpec((Hd, Cp), lambda i: (0, 0)),
                pl.BlockSpec((1, Cp), lambda i: (0, 0)),
            ],
            out_specs=pl.BlockSpec((tb, Cp), lambda i: (i, 0)),
        ),
        compiler_params=pltpu.CompilerParams(
            dimension_semantics=("parallel",),
            vmem_limit_bytes=32 * 1024 * 1024,
        ),
        cost_estimate=pl.CostEstimate(
            flops=flops, transcendentals=0, bytes_accessed=bytes_accessed),
    )(qflat, wexp, bp, w1, b1, w2, b2)


# ----------------------------------------------------------------------------
# P3Classifier forward (tiny param-only plumbing in JAX, all heavy work in
# kernel 1; all matmuls batched in kernel 2).
# ----------------------------------------------------------------------------
def p3_classifier_forward(x, params):
    """x: (B, C, H, W) NCHW float32 -> logits (B, num_classes)."""
    B, C, H, W = x.shape
    p = PATCH
    assert H % p == 0 and W % p == 0, "spatial dims must be multiples of patch"
    n_tokens = (H // p) * (W // p)
    E = params["w_patch"].shape[1]
    num_classes = params["w2"].shape[1]

    # Kernel 1: read x exactly once; row-fold reduction -> (B, C, p, W).
    trh = _choose_row_tile(C, H, W)
    q = _pooled_rowfold(x.astype(jnp.float32), p=p, trh=trh)

    # Param/size-only plumbing (KBs): flatten q, build the expanded patch
    # weight w_exp[(c,kh,w),e] = w_patch[(c,kh,w%p),e] / N (column fold + mean
    # folded into the weight), pad to lane/sublane-dense shapes.
    CK = C * p * W
    CKp = _round_up(CK, LANE)
    Cp = _round_up(num_classes, LANE)
    Bp = _round_up(B, 8)
    tb = Bp if Bp <= 256 else 256
    Bp = _round_up(Bp, tb)

    qflat = q.reshape(B, CK)
    qflat = jnp.pad(qflat, ((0, Bp - B), (0, CKp - CK)))

    gw = W // p
    w3 = params["w_patch"].reshape(C, p, p, E)
    # TODO(synk): for very wide images (large W) fold the gw column-sum inside
    # kernel 1 instead, to keep this expanded weight (C*p*W, E) small.
    wexp = jnp.tile(w3, (1, 1, gw, 1)).reshape(CK, E) * (1.0 / n_tokens)
    wexp = jnp.pad(wexp, ((0, CKp - CK), (0, 0))).astype(jnp.float32)

    bp = params["b_patch"].astype(jnp.float32)
    w1 = params["w1"].astype(jnp.float32)
    b1 = params["b1"].astype(jnp.float32)
    w2 = jnp.pad(params["w2"],
                 ((0, 0), (0, Cp - num_classes))).astype(jnp.float32)
    b2 = jnp.pad(params["b2"],
                 ((0, 0), (0, Cp - num_classes))).astype(jnp.float32)

    logits = _head_forward(qflat, wexp, bp, w1, b1, w2, b2, tb=tb)
    return logits[:B, :num_classes]


def init_params(key, in_channels, num_classes):
    kp, k1, k2, kb = jax.random.split(key, 4)
    K = in_channels * PATCH * PATCH
    return {
        # patch-embedding conv, flattened to a (K, 768) matmul weight
        "w_patch": jax.random.normal(kp, (K, EMBED), jnp.float32) * 0.02,
        "b_patch": jnp.zeros((1, EMBED), jnp.float32),
        # classifier: Linear(768,512) -> ReLU -> Dropout -> Linear(512,classes)
        "w1": jax.random.normal(k1, (EMBED, HIDDEN), jnp.float32) * 0.02,
        "b1": jnp.full((1, HIDDEN), 0.01, jnp.float32),
        "w2": jax.random.normal(k2, (HIDDEN, num_classes), jnp.float32) * 0.02,
        "b2": jax.random.normal(kb, (1, num_classes), jnp.float32) * 0.01,
    }


def reference_forward(x, params):
    """Pure-JAX f32 reference for correctness check."""
    B, C, H, W = x.shape
    p = PATCH
    gh, gw = H // p, W // p
    patches = x.reshape(B, C, gh, p, gw, p)
    patches = jnp.transpose(patches, (0, 2, 4, 1, 3, 5)).reshape(B, gh * gw, -1)
    tok = patches @ params["w_patch"] + params["b_patch"]
    pooled = tok.mean(axis=1)
    h = jnp.maximum(pooled @ params["w1"] + params["b1"], 0.0)
    return h @ params["w2"] + params["b2"]


# TODO(synk): training-mode Dropout(p=0.25) (RNG masking) is not implemented;
# this is the inference forward pass only.

if __name__ == "__main__":
    B, C, H, W = 2, 4, 16, 16
    num_classes = 10

    key = jax.random.PRNGKey(0)
    kx, kparam = jax.random.split(key)
    x = jax.random.normal(kx, (B, C, H, W), jnp.float32)
    params = init_params(kparam, C, num_classes)

    fwd = jax.jit(p3_classifier_forward)
    out = jax.block_until_ready(fwd(x, params))

    ref = reference_forward(x, params)
    assert out.shape == (B, num_classes), out.shape
    assert jnp.allclose(out, ref, atol=5e-3, rtol=5e-2), (
        "mismatch vs reference, max abs err = "
        f"{float(jnp.max(jnp.abs(out - ref)))}")

    print("KERNEL_OK")
</pallas_src>

<mosaic_0001>
module attributes {stable_mosaic.version = 11 : i64} {
  func.func @_pool_rows_kernel(%arg0: i32, %arg1: i32, %arg2: memref<1x4x16x16xf32, #tpu.memory_space<vmem>>, %arg3: memref<1x4x4x16xf32, #tpu.memory_space<vmem>>, %arg4: memref<4x16x16xf32, #tpu.memory_space<vmem>>) attributes {dimension_semantics = [#tpu.dimension_semantics<parallel>, #tpu.dimension_semantics<arbitrary>], iteration_bounds = array<i64: 2, 1>, scalar_prefetch = 0 : i64, scratch_operands = 1 : i64, tpu.core_type = #tpu.core_type<tc>, window_params = [{transform_indices = @transform_0, window_bounds = array<i64: 1, 4, 16, 16>}, {transform_indices = @transform_1, window_bounds = array<i64: 1, 4, 4, 16>}]} {
    %c0_i32 = arith.constant 0 : i32
    %0 = arith.cmpi eq, %arg1, %c0_i32 : i32
    %1 = arith.extui %0 : i1 to i32
    %c0_i32_0 = arith.constant 0 : i32
    %2 = arith.cmpi ne, %1, %c0_i32_0 : i32
    scf.if %2 {
      %cst = arith.constant 0.000000e+00 : f32
      %11 = vector.broadcast %cst : f32 to vector<4x16x16xf32>
      %c0_12 = arith.constant 0 : index
      %c0_13 = arith.constant 0 : index
      %c0_14 = arith.constant 0 : index
      %12 = vector.load %arg4[%c0_12, %c0_13, %c0_14] : memref<4x16x16xf32, #tpu.memory_space<vmem>>, vector<4x16x16xf32>
      tpu.vector_store %arg4[%c0_12, %c0_13, %c0_14], %11 {strides = array<i32>} : memref<4x16x16xf32, #tpu.memory_space<vmem>>, vector<4x16x16xf32>,
    } else {
    }
    %c0 = arith.constant 0 : index
    %c0_1 = arith.constant 0 : index
    %c0_2 = arith.constant 0 : index
    %3 = vector.load %arg4[%c0, %c0_1, %c0_2] : memref<4x16x16xf32, #tpu.memory_space<vmem>>, vector<4x16x16xf32>
    %c0_3 = arith.constant 0 : index
    %c0_4 = arith.constant 0 : index
    %c0_5 = arith.constant 0 : index
    %c0_6 = arith.constant 0 : index
    %4 = vector.load %arg2[%c0_3, %c0_4, %c0_5, %c0_6] : memref<1x4x16x16xf32, #tpu.memory_space<vmem>>, vector<1x4x16x16xf32>
    %5 = vector.shape_cast %4 : vector<1x4x16x16xf32> to vector<4x16x16xf32>
    %6 = arith.addf %3, %5 : vector<4x16x16xf32>
    %c0_7 = arith.constant 0 : index
    %c0_8 = arith.constant 0 : index
    %c0_9 = arith.constant 0 : index
    %7 = vector.load %arg4[%c0_7, %c0_8, %c0_9] : memref<4x16x16xf32, #tpu.memory_space<vmem>>, vector<4x16x16xf32>
    tpu.vector_store %arg4[%c0_7, %c0_8, %c0_9], %6 {strides = array<i32>} : memref<4x16x16xf32, #tpu.memory_space<vmem>>, vector<4x16x16xf32>,
    %c0_i32_10 = arith.constant 0 : i32
    %8 = arith.cmpi eq, %arg1, %c0_i32_10 : i32
    %9 = arith.extui %8 : i1 to i32
    %c0_i32_11 = arith.constant 0 : i32
    %10 = arith.cmpi ne, %9, %c0_i32_11 : i32
    scf.if %10 {
      %c0_12 = arith.constant 0 : index
      %c0_13 = arith.constant 0 : index
      %c0_14 = arith.constant 0 : index
      %11 = vector.load %arg4[%c0_12, %c0_13, %c0_14] : memref<4x16x16xf32, #tpu.memory_space<vmem>>, vector<4x16x16xf32>
      %12 = vector.extract_strided_slice %11 {offsets = [0, 0, 0], sizes = [4, 4, 16], strides = [1, 1, 1]} : vector<4x16x16xf32> to vector<4x4x16xf32>
      %13 = vector.extract_strided_slice %11 {offsets = [0, 4, 0], sizes = [4, 4, 16], strides = [1, 1, 1]} : vector<4x16x16xf32> to vector<4x4x16xf32>
      %14 = arith.addf %12, %13 : vector<4x4x16xf32>
      %15 = vector.extract_strided_slice %11 {offsets = [0, 8, 0], sizes = [4, 4, 16], strides = [1, 1, 1]} : vector<4x16x16xf32> to vector<4x4x16xf32>
      %16 = arith.addf %14, %15 : vector<4x4x16xf32>
      %17 = vector.extract_strided_slice %11 {offsets = [0, 12, 0], sizes = [4, 4, 16], strides = [1, 1, 1]} : vector<4x16x16xf32> to vector<4x4x16xf32>
      %18 = arith.addf %16, %17 : vector<4x4x16xf32>
      %c0_15 = arith.constant 0 : index
      %c0_16 = arith.constant 0 : index
      %c0_17 = arith.constant 0 : index
      %c0_18 = arith.constant 0 : index
      %19 = vector.load %arg3[%c0_15, %c0_16, %c0_17, %c0_18] : memref<1x4x4x16xf32, #tpu.memory_space<vmem>>, vector<1x4x4x16xf32>
      %20 = vector.shape_cast %19 : vector<1x4x4x16xf32> to vector<4x4x16xf32>
      %21 = vector.shape_cast %18 : vector<4x4x16xf32> to vector<1x4x4x16xf32>
      tpu.vector_store %arg3[%c0_15, %c0_16, %c0_17, %c0_18], %21 {strides = array<i32>} : memref<1x4x4x16xf32, #tpu.memory_space<vmem>>, vector<1x4x4x16xf32>,
    } else {
    }
    return
  }
  func.func @transform_0(%arg0: i32, %arg1: i32) -> (i32, i32, i32, i32) {
    %c0_i32 = arith.constant 0 : i32
    %c0_i32_0 = arith.constant 0 : i32
    %c0_i32_1 = arith.constant 0 : i32
    return %arg0, %c0_i32, %arg1, %c0_i32_0 : i32, i32, i32, i32
  }
  func.func @transform_1(%arg0: i32, %arg1: i32) -> (i32, i32, i32, i32) {
    %c0_i32 = arith.constant 0 : i32
    %c0_i32_0 = arith.constant 0 : i32
    %c0_i32_1 = arith.constant 0 : i32
    %c0_i32_2 = arith.constant 0 : i32
    return %arg0, %c0_i32, %c0_i32_0, %c0_i32_1 : i32, i32, i32, i32
  }
}

module attributes {stable_mosaic.version = 11 : i64} {
  func.func @_head_kernel(%arg0: i32, %arg1: memref<8x256xf32, #tpu.memory_space<vmem>>, %arg2: memref<256x768xf32, #tpu.memory_space<vmem>>, %arg3: memref<1x768xf32, #tpu.memory_space<vmem>>, %arg4: memref<768x512xf32, #tpu.memory_space<vmem>>, %arg5: memref<1x512xf32, #tpu.memory_space<vmem>>, %arg6: memref<512x128xf32, #tpu.memory_space<vmem>>, %arg7: memref<1x128xf32, #tpu.memory_space<vmem>>, %arg8: memref<8x128xf32, #tpu.memory_space<vmem>>) attributes {dimension_semantics = [#tpu.dimension_semantics<parallel>], iteration_bounds = array<i64: 1>, scalar_prefetch = 0 : i64, scratch_operands = 0 : i64, tpu.core_type = #tpu.core_type<tc>, window_params = [{transform_indices = @transform_0, window_bounds = array<i64: 8, 256>}, {pipeline_mode = #tpu.pipeline_mode<synchronous>, transform_indices = @transform_1, window_bounds = array<i64: 256, 768>}, {pipeline_mode = #tpu.pipeline_mode<synchronous>, transform_indices = @transform_2, window_bounds = array<i64: 1, 768>}, {pipeline_mode = #tpu.pipeline_mode<synchronous>, transform_indices = @transform_3, window_bounds = array<i64: 768, 512>}, {pipeline_mode = #tpu.pipeline_mode<synchronous>, transform_indices = @transform_4, window_bounds = array<i64: 1, 512>}, {pipeline_mode = #tpu.pipeline_mode<synchronous>, transform_indices = @transform_5, window_bounds = array<i64: 512, 128>}, {pipeline_mode = #tpu.pipeline_mode<synchronous>, transform_indices = @transform_6, window_bounds = array<i64: 1, 128>}, {transform_indices = @transform_7, window_bounds = array<i64: 8, 128>}]} {
    %c0 = arith.constant 0 : index
    %c0_0 = arith.constant 0 : index
    %0 = vector.load %arg1[%c0, %c0_0] : memref<8x256xf32, #tpu.memory_space<vmem>>, vector<8x256xf32>
    %c0_1 = arith.constant 0 : index
    %c0_2 = arith.constant 0 : index
    %1 = vector.load %arg2[%c0_1, %c0_2] : memref<256x768xf32, #tpu.memory_space<vmem>>, vector<256x768xf32>
    %cst = arith.constant dense<0.000000e+00> : vector<8x768xf32>
    %2 = tpu.matmul %0, %1, %cst {dimension_numbers = #tpu.dot_dimension_numbers<[1], [0], [0], [1], [0, 0, 1, 1], [], []>} : vector<8x256xf32>, vector<256x768xf32>, vector<8x768xf32> -> vector<8x768xf32>
    %c0_3 = arith.constant 0 : index
    %c0_4 = arith.constant 0 : index
    %3 = vector.load %arg3[%c0_3, %c0_4] : memref<1x768xf32, #tpu.memory_space<vmem>>, vector<1x768xf32>
    %4 = vector.broadcast %3 : vector<1x768xf32> to vector<8x768xf32>
    %5 = arith.addf %2, %4 : vector<8x768xf32>
    %c0_5 = arith.constant 0 : index
    %c0_6 = arith.constant 0 : index
    %6 = vector.load %arg4[%c0_5, %c0_6] : memref<768x512xf32, #tpu.memory_space<vmem>>, vector<768x512xf32>
    %cst_7 = arith.constant dense<0.000000e+00> : vector<8x512xf32>
    %7 = tpu.matmul %5, %6, %cst_7 {dimension_numbers = #tpu.dot_dimension_numbers<[1], [0], [0], [1], [0, 0, 1, 1], [], []>} : vector<8x768xf32>, vector<768x512xf32>, vector<8x512xf32> -> vector<8x512xf32>
    %c0_8 = arith.constant 0 : index
    %c0_9 = arith.constant 0 : index
    %8 = vector.load %arg5[%c0_8, %c0_9] : memref<1x512xf32, #tpu.memory_space<vmem>>, vector<1x512xf32>
    %9 = vector.broadcast %8 : vector<1x512xf32> to vector<8x512xf32>
    %10 = arith.addf %7, %9 : vector<8x512xf32>
    %cst_10 = arith.constant 0.000000e+00 : f32
    %11 = vector.broadcast %cst_10 : f32 to vector<8x512xf32>
    %12 = arith.maximumf %10, %11 : vector<8x512xf32>
    %c0_11 = arith.constant 0 : index
    %c0_12 = arith.constant 0 : index
    %13 = vector.load %arg6[%c0_11, %c0_12] : memref<512x128xf32, #tpu.memory_space<vmem>>, vector<512x128xf32>
    %cst_13 = arith.constant dense<0.000000e+00> : vector<8x128xf32>
    %14 = tpu.matmul %12, %13, %cst_13 {dimension_numbers = #tpu.dot_dimension_numbers<[1], [0], [0], [1], [0, 0, 1, 1], [], []>} : vector<8x512xf32>, vector<512x128xf32>, vector<8x128xf32> -> vector<8x128xf32>
    %c0_14 = arith.constant 0 : index
    %c0_15 = arith.constant 0 : index
    %15 = vector.load %arg7[%c0_14, %c0_15] : memref<1x128xf32, #tpu.memory_space<vmem>>, vector<1x128xf32>
    %16 = vector.broadcast %15 : vector<1x128xf32> to vector<8x128xf32>
    %17 = arith.addf %14, %16 : vector<8x128xf32>
    %c0_16 = arith.constant 0 : index
    %c0_17 = arith.constant 0 : index
    %18 = vector.load %arg8[%c0_16, %c0_17] : memref<8x128xf32, #tpu.memory_space<vmem>>, vector<8x128xf32>
    tpu.vector_store %arg8[%c0_16, %c0_17], %17 {strides = array<i32>} : memref<8x128xf32, #tpu.memory_space<vmem>>, vector<8x128xf32>,
    return
  }
  func.func @transform_0(%arg0: i32) -> (i32, i32) {
    %c0_i32 = arith.constant 0 : i32
    %c0_i32_0 = arith.constant 0 : i32
    return %arg0, %c0_i32 : i32, i32
  }
  func.func @transform_1(%arg0: i32) -> (i32, i32) {
    %c0_i32 = arith.constant 0 : i32
    %c0_i32_0 = arith.constant 0 : i32
    %c0_i32_1 = arith.constant 0 : i32
    return %c0_i32, %c0_i32_0 : i32, i32
  }
  func.func @transform_2(%arg0: i32) -> (i32, i32) {
    %c0_i32 = arith.constant 0 : i32
    %c0_i32_0 = arith.constant 0 : i32
    %c0_i32_1 = arith.constant 0 : i32
    return %c0_i32, %c0_i32_0 : i32, i32
  }
  func.func @transform_3(%arg0: i32) -> (i32, i32) {
    %c0_i32 = arith.constant 0 : i32
    %c0_i32_0 = arith.constant 0 : i32
    %c0_i32_1 = arith.constant 0 : i32
    return %c0_i32, %c0_i32_0 : i32, i32
  }
  func.func @transform_4(%arg0: i32) -> (i32, i32) {
    %c0_i32 = arith.constant 0 : i32
    %c0_i32_0 = arith.constant 0 : i32
    %c0_i32_1 = arith.constant 0 : i32
    return %c0_i32, %c0_i32_0 : i32, i32
  }
  func.func @transform_5(%arg0: i32) -> (i32, i32) {
    %c0_i32 = arith.constant 0 : i32
    %c0_i32_0 = arith.constant 0 : i32
    %c0_i32_1 = arith.constant 0 : i32
    return %c0_i32, %c0_i32_0 : i32, i32
  }
  func.func @transform_6(%arg0: i32) -> (i32, i32) {
    %c0_i32 = arith.constant 0 : i32
    %c0_i32_0 = arith.constant 0 : i32
    %c0_i32_1 = arith.constant 0 : i32
    return %c0_i32, %c0_i32_0 : i32, i32
  }
  func.func @transform_7(%arg0: i32) -> (i32, i32) {
    %c0_i32 = arith.constant 0 : i32
    %c0_i32_0 = arith.constant 0 : i32
    return %arg0, %c0_i32 : i32, i32
  }
}

</mosaic_0001>

<llo_original>
// kernel: p3_classifier_forward.2
$region0: #{p3_classifier_forward.2}
  #allocation0 [shape = 'u32[]', space=smem, size = 0x4, offset = 0x4, fixed_abs, tag = 'smem constant byte address 0x4 - core index']
  #allocation1 [shape = 'u32[144,128]{1,0:T(1,128)}', space=vmem, size = 0x12000, scoped, tag = 'internal scratch']
  #allocation2 [shape = 'f32[4,16,16]{2,1,0:T(8,128)}', space=vmem, size = 0x8000, scoped, tag = 'scratch operand']
  %s0 = inlined_call_operand.vmem [shape: f32[2,4,16,16], index: 0, kind: input, shape index: {}]
  %s1 = inlined_call_operand.vmem [shape: f32[2,4,4,16], index: 1, kind: output, shape index: {}]
  %s2 = sld [smem:[#allocation0]]
  $region45: #{p3_classifier_forward.2} parent=0
    _
  %s4 = ssub.s32 1, %s2
  %s5 = scalar_select 0, %s4, %s2
  loop: start=0, step=1, limit=4
  $region2: #{p3_classifier_forward.2} parent=0 // loop_pre_header
    _
  $region3: #{p3_classifier_forward.2} parent=0 // loop_header
    %s7 = sphi 0, %s11
    %p8 = scmp.ge.s32.totalorder %s7, 4
    %s14 = sphi 0, %s26
    %s15 = sphi 0, %s22
    %s16 = sphi 0, %s14
    %s17 = sphi 0, %s15
    %s18 = sphi 0, %s16
    %s19 = sphi 0, %s17
    %s31 = sphi 0, %s33
    %s34 = sphi 0, %s31
    %s35 = sphi 0, %s34
    %s51 = sphi 0, %s35
    %s57 = sphi 0, %s59
    %s60 = sphi 0, %s57
    %s61 = sphi 0, %s60
    %s77 = sphi 0, %s61
  $region4: #{p3_classifier_forward.2} parent=0 // loop_header_branch
    %10 = sbr.rel (%p8) target = $region8
  $region5: #{p3_classifier_forward.2} parent=0 // loop_body
    %s12 = ssub.s32 %s7, 1
    %s13 = ssub.s32 %s7, 2
    %s20 = sadd.s32 1, %s15
    %p21 = scmp.ge.s32.totalorder %s20, 1
    %s22 = scalar_select %p21, 0, %s20
    %s23 = sadd.s32 1, %s14
    %s24 = scalar_select %p21, %s23, %s14
    %p25 = scmp.ge.s32.totalorder %s24, 2
    %s26 = scalar_select %p25, 0, %s24
    %s27 = ssub.s32 %s14, %s26
    %s28 = ssub.s32 %s15, %s22
    %s29 = sor.u32 %s27, %s28
    %p30 = scmp.eq.s32.totalorder %s29, 0
    %s32 = sadd.s32 %s31, 1
    %s33 = scalar_select %p30, %s31, %s32
    %p36 = pneg %p30
    %p37 = scmp.eq.s32.totalorder %s7, 1
    %p38 = por %p36, %p37
    %p39 = scmp.ne.s32.totalorder %s31, %s34
    %p40 = scmp.eq.s32.totalorder %s7, 0
    %p41 = por %p39, %p40
    %p42 = scmp.ne.s32.totalorder %s31, %s34
    %p43 = scmp.eq.s32.totalorder %s12, 1
    %p44 = por %p42, %p43
    %p45 = scmp.ne.s32.totalorder %s34, %s35
    %p46 = scmp.eq.s32.totalorder %s12, 0
    %p47 = por %p45, %p46
    %p48 = scmp.ne.s32.totalorder %s34, %s35
    %p49 = scmp.eq.s32.totalorder %s13, 1
    %p50 = por %p48, %p49
    %p52 = scmp.ne.s32.totalorder %s35, %s51
    %p53 = scmp.eq.s32.totalorder %s13, 0
    %p54 = por %p52, %p53
    %s55 = ssub.s32 %s14, %s26
    %p56 = scmp.eq.s32.totalorder %s55, 0
    %s58 = sadd.s32 %s57, 1
    %s59 = scalar_select %p56, %s57, %s58
    %p62 = pneg %p56
    %p63 = scmp.eq.s32.totalorder %s7, 1
    %p64 = por %p62, %p63
    %p65 = scmp.ne.s32.totalorder %s57, %s60
    %p66 = scmp.eq.s32.totalorder %s7, 0
    %p67 = por %p65, %p66
    %p68 = scmp.ne.s32.totalorder %s57, %s60
    %p69 = scmp.eq.s32.totalorder %s12, 1
    %p70 = por %p68, %p69
    %p71 = scmp.ne.s32.totalorder %s60, %s61
    %p72 = scmp.eq.s32.totalorder %s12, 0
    %p73 = por %p71, %p72
    %p74 = scmp.ne.s32.totalorder %s60, %s61
    %p75 = scmp.eq.s32.totalorder %s13, 1
    %p76 = por %p74, %p75
    %p78 = scmp.ne.s32.totalorder %s61, %s77
    %p79 = scmp.eq.s32.totalorder %s13, 0
    %p80 = por %p78, %p79
    %p81 = scmp.le.s32.totalorder 1, %s7
    %p82 = scmp.lt.s32.totalorder %s7, 3
    %p83 = pnand %p81, %p82
    %p84 = pneg %p83
    // Predicated region
    $region9: #{p3_classifier_forward.2} parent=5 // pred_check
      _
    $region10: #{p3_classifier_forward.2} parent=5 // pred_check_branch
      %86 = sbr.rel (%p83) target = $region12
    $region11: #{p3_classifier_forward.2} parent=5 // pred_region
      %s87 = ssub.s32 %s7, 1
    $region12: #{p3_classifier_forward.2} parent=5 // pred_fallthru
      _
    %p88 = scmp.lt.s32.totalorder %s7, 2
    // Predicated region
    $region13: #{p3_classifier_forward.2} parent=5 // pred_check
      %p89 = pneg %p88
    $region14: #{p3_classifier_forward.2} parent=5 // pred_check_branch
      %91 = sbr.rel (%p89) target = $region16
    $region15: #{p3_classifier_forward.2} parent=5 // pred_region
      // Predicated region
      $region17: #{p3_classifier_forward.2} parent=15 // pred_check
        %p92 = pneg %p41
      $region18: #{p3_classifier_forward.2} parent=15 // pred_check_branch
        %94 = sbr.rel (%p92) target = $region20
      $region19: #{p3_classifier_forward.2} parent=15 // pred_region
        %s95 = smul.u32 2, %s15
        %p96 = scmp.lt.s32.totalorder %s14, 1
        %s97 = scalar_select %p96, %s14, 1
        %p98 = scmp.lt.s32.totalorder %s95, 1
        %s99 = scalar_select %p98, %s95, 1
        %s100 = smul.addr %s97, 8
        %s101 = sadd.s32 %s99, %s100
        %s102 = smul.addr %s101, 8
        %s103 = scalar_lea.vmem %s0, %s102
        %s104 = smul.u32 2, %s15
      $region20: #{p3_classifier_forward.2} parent=15 // pred_fallthru
        _
    $region16: #{p3_classifier_forward.2} parent=5 // pred_fallthru
      _
    %p105 = scmp.le.s32.totalorder 1, %s7
    %p106 = scmp.lt.s32.totalorder %s7, 3
    %p107 = pnand %p105, %p106
    %p108 = pneg %p107
    // Predicated region
    $region21: #{p3_classifier_forward.2} parent=5 // pred_check
      _
    $region22: #{p3_classifier_forward.2} parent=5 // pred_check_branch
      %110 = sbr.rel (%p107) target = $region24
    $region23: #{p3_classifier_forward.2} parent=5 // pred_region
      %s111 = ssub.s32 %s7, 1
      %s112 = smul.u32 2, %s17
      %p113 = scmp.lt.s32.totalorder %s16, 1
      %s114 = scalar_select %p113, %s16, 1
      %p115 = scmp.lt.s32.totalorder %s112, 1
      %s116 = scalar_select %p115, %s112, 1
      %s117 = smul.addr %s114, 8
      %s118 = sadd.s32 %s116, %s117
      %s119 = smul.addr %s118, 8
      %s120 = scalar_lea.vmem %s0, %s119
      %p121 = pneg %p47
      %p122 = pneg %p44
      %p123 = pneg %p73
      %p124 = pneg %p70
      %p125 = scmp.lt.s32.totalorder %s16, 1
      %s126 = scalar_select %p125, %s16, 1
      %s127 = smul.addr %s126, 4
      %s128 = smul.addr %s127, 4
      %s129 = scalar_lea.vmem %s1, %s128
      %s130 = smul.u32 2, %s17
      %p131 = scmp.lt.s32.totalorder %s16, 1
      %s132 = scalar_select %p131, %s16, 1
      %p133 = scmp.lt.s32.totalorder %s130, 1
      %s134 = scalar_select %p133, %s130, 1
      %s135 = smul.addr %s132, 8
      %s136 = sadd.s32 %s134, %s135
      %s137 = smul.addr %s136, 8
      %s138 = scalar_lea.vmem %s0, %s137
      %s139 = smul.u32 2, %s17
      %p140 = scmp.lt.s32.totalorder %s16, 1
      %s141 = scalar_select %p140, %s16, 1
      %s142 = smul.addr %s141, 4
      %s143 = smul.addr %s142, 4
      %s144 = scalar_lea.vmem %s1, %s143
      %p145 = scmp.eq.s32.totalorder %s17, 0
      // Predicated region
      $region25: #{p3_classifier_forward.2} parent=23 // pred_check
        %p146 = pneg %p145
      $region26: #{p3_classifier_forward.2} parent=23 // pred_check_branch
        %148 = sbr.rel (%p146) target = $region28
      $region27: #{p3_classifier_forward.2} parent=23 // pred_region
        %vm149 = vcmask 130048
        %150 = vst.msk [vmem:[#allocation2] sm:$0xff] %vm149, 0.0
        %151 = vst.msk [vmem:[#allocation2 + $0x8] sm:$0xff] %vm149, 0.0
        %152 = vst.msk [vmem:[#allocation2 + $0x10] sm:$0xff] %vm149, 0.0
        %153 = vst.msk [vmem:[#allocation2 + $0x18] sm:$0xff] %vm149, 0.0
        %154 = vst.msk [vmem:[#allocation2 + $0x20] sm:$0xff] %vm149, 0.0
        %155 = vst.msk [vmem:[#allocation2 + $0x28] sm:$0xff] %vm149, 0.0
        %156 = vst.msk [vmem:[#allocation2 + $0x30] sm:$0xff] %vm149, 0.0
        %157 = vst.msk [vmem:[#allocation2 + $0x38] sm:$0xff] %vm149, 0.0
      $region28: #{p3_classifier_forward.2} parent=23 // pred_fallthru
        _
      %v158 = vld [vmem:[#allocation2] sm:$0xff]
      %v159 = vld [vmem:[#allocation2 + $0x8] sm:$0xff]
      %v160 = vld [vmem:[#allocation2 + $0x10] sm:$0xff]
      %v161 = vld [vmem:[#allocation2 + $0x18] sm:$0xff]
      %v162 = vld [vmem:[#allocation2 + $0x20] sm:$0xff]
      %v163 = vld [vmem:[#allocation2 + $0x28] sm:$0xff]
      %v164 = vld [vmem:[#allocation2 + $0x30] sm:$0xff]
      %v165 = vld [vmem:[#allocation2 + $0x38] sm:$0xff]
      %v166 = vld [vmem:[%s138] sm:$0xff]
      %v167 = vld [vmem:[%s138 + $0x8] sm:$0xff]
      %v168 = vld [vmem:[%s138 + $0x10] sm:$0xff]
      %v169 = vld [vmem:[%s138 + $0x18] sm:$0xff]
      %v170 = vld [vmem:[%s138 + $0x20] sm:$0xff]
      %v171 = vld [vmem:[%s138 + $0x28] sm:$0xff]
      %v172 = vld [vmem:[%s138 + $0x30] sm:$0xff]
      %v173 = vld [vmem:[%s138 + $0x38] sm:$0xff]
      %v174 = vadd.f32 %v158, %v166
      %v175 = vadd.f32 %v159, %v167
      %v176 = vadd.f32 %v160, %v168
      %v177 = vadd.f32 %v161, %v169
      %v178 = vadd.f32 %v162, %v170
      %v179 = vadd.f32 %v163, %v171
      %v180 = vadd.f32 %v164, %v172
      %v181 = vadd.f32 %v165, %v173
      %vm182 = vcmask 130048
      %183 = vst.msk [vmem:[#allocation2] sm:$0xff] %vm182, %v174
      %184 = vst.msk [vmem:[#allocation2 + $0x8] sm:$0xff] %vm182, %v175
      %185 = vst.msk [vmem:[#allocation2 + $0x10] sm:$0xff] %vm182, %v176
      %186 = vst.msk [vmem:[#allocation2 + $0x18] sm:$0xff] %vm182, %v177
      %187 = vst.msk [vmem:[#allocation2 + $0x20] sm:$0xff] %vm182, %v178
      %188 = vst.msk [vmem:[#allocation2 + $0x28] sm:$0xff] %vm182, %v179
      %189 = vst.msk [vmem:[#allocation2 + $0x30] sm:$0xff] %vm182, %v180
      %190 = vst.msk [vmem:[#allocation2 + $0x38] sm:$0xff] %vm182, %v181
      // Predicated region
      $region29: #{p3_classifier_forward.2} parent=23 // pred_check
        %p191 = pneg %p145
      $region30: #{p3_classifier_forward.2} parent=23 // pred_check_branch
        %193 = sbr.rel (%p191) target = $region32
      $region31: #{p3_classifier_forward.2} parent=23 // pred_region
        %v194 = vld [vmem:[#allocation2] sm:$0xff]
        %v195 = vld [vmem:[#allocation2 + $0x8] sm:$0xff]
        %v196 = vld [vmem:[#allocation2 + $0x10] sm:$0xff]
        %v197 = vld [vmem:[#allocation2 + $0x18] sm:$0xff]
        %v198 = vld [vmem:[#allocation2 + $0x20] sm:$0xff]
        %v199 = vld [vmem:[#allocation2 + $0x28] sm:$0xff]
        %v200 = vld [vmem:[#allocation2 + $0x30] sm:$0xff]
        %v201 = vld [vmem:[#allocation2 + $0x38] sm:$0xff]
        %v206 = vrot.slane %v194, 4
        %v207 = vrot.slane %v196, 4
        %v208 = vrot.slane %v198, 4
        %v209 = vrot.slane %v200, 4
        %v214 = vadd.f32 %v194, %v206
        %v215 = vadd.f32 %v196, %v207
        %v216 = vadd.f32 %v198, %v208
        %v217 = vadd.f32 %v200, %v209
        %v218 = vadd.f32 %v214, %v195
        %v219 = vadd.f32 %v215, %v197
        %v220 = vadd.f32 %v216, %v199
        %v221 = vadd.f32 %v217, %v201
        %v226 = vrot.slane %v195, 4
        %v227 = vrot.slane %v197, 4
        %v228 = vrot.slane %v199, 4
        %v229 = vrot.slane %v201, 4
        %v234 = vadd.f32 %v218, %v226
        %v235 = vadd.f32 %v219, %v227
        %v236 = vadd.f32 %v220, %v228
        %v237 = vadd.f32 %v221, %v229
        %vm238 = vcmask 125952
        %239 = vst.msk [vmem:[%s144] sm:$0xf] %vm238, %v234
        %240 = vst.msk [vmem:[%s144 + $0x4] sm:$0xf] %vm238, %v235
        %241 = vst.msk [vmem:[%s144 + $0x8] sm:$0xf] %vm238, %v236
        %242 = vst.msk [vmem:[%s144 + $0xc] sm:$0xf] %vm238, %v237
      $region32: #{p3_classifier_forward.2} parent=23 // pred_fallthru
        _
      %p243 = scmp.lt.s32.totalorder %s16, 1
      %s244 = scalar_select %p243, %s16, 1
      %s245 = smul.addr %s244, 4
      %s246 = smul.addr %s245, 4
      %s247 = scalar_lea.vmem %s1, %s246
      // Predicated region
      $region33: #{p3_classifier_forward.2} parent=23 // pred_check
        %p248 = pneg %p70
      $region34: #{p3_classifier_forward.2} parent=23 // pred_check_branch
        %250 = sbr.rel (%p248) target = $region36
      $region35: #{p3_classifier_forward.2} parent=23 // pred_region
        _
      $region36: #{p3_classifier_forward.2} parent=23 // pred_fallthru
        _
    $region24: #{p3_classifier_forward.2} parent=5 // pred_fallthru
      _
    %p251 = scmp.le.s32.totalorder 2, %s7
    // Predicated region
    $region37: #{p3_classifier_forward.2} parent=5 // pred_check
      %p252 = pneg %p251
    $region38: #{p3_classifier_forward.2} parent=5 // pred_check_branch
      %254 = sbr.rel (%p252) target = $region40
    $region39: #{p3_classifier_forward.2} parent=5 // pred_region
      %s255 = ssub.s32 %s7, 2
      // Predicated region
      $region41: #{p3_classifier_forward.2} parent=39 // pred_check
        %p256 = pneg %p76
      $region42: #{p3_classifier_forward.2} parent=39 // pred_check_branch
        %258 = sbr.rel (%p256) target = $region44
      $region43: #{p3_classifier_forward.2} parent=39 // pred_region
        %p259 = scmp.lt.s32.totalorder %s18, 1
        %s260 = scalar_select %p259, %s18, 1
        %s261 = smul.addr %s260, 4
        %s262 = smul.addr %s261, 4
        %s263 = scalar_lea.vmem %s1, %s262
      $region44: #{p3_classifier_forward.2} parent=39 // pred_fallthru
        _
    $region40: #{p3_classifier_forward.2} parent=5 // pred_fallthru
      _
  $region6: #{p3_classifier_forward.2} parent=0 // loop_footer
    %s11 = sadd.s32 1, %s7
  $region7: #{p3_classifier_forward.2} parent=0 // loop_footer_branch
    %6 = sbr.rel target = $region3
  $region8: #{p3_classifier_forward.2} parent=0 // loop_exit
    _

// kernel: p3_classifier_forward.3
$region0: #{p3_classifier_forward.3}
  #allocation0 [shape = 'u32[]', space=smem, size = 0x4, offset = 0x4, fixed_abs, tag = 'smem constant byte address 0x4 - core index']
  #allocation1 [shape = 'u32[144,128]{1,0:T(1,128)}', space=vmem, size = 0x12000, scoped, tag = 'internal scratch']
  %s0 = inlined_call_operand.vmem [shape: f32[8,256], index: 0, kind: input, shape index: {}]
  %s1 = inlined_call_operand.vmem [shape: f32[256,768], index: 1, kind: input, shape index: {}]
  %s2 = inlined_call_operand.vmem [shape: f32[1,768], index: 2, kind: input, shape index: {}]
  %s3 = inlined_call_operand.vmem [shape: f32[768,512], index: 3, kind: input, shape index: {}]
  %s4 = inlined_call_operand.vmem [shape: f32[1,512], index: 4, kind: input, shape index: {}]
  %s5 = inlined_call_operand.vmem [shape: f32[512,128], index: 5, kind: input, shape index: {}]
  %s6 = inlined_call_operand.vmem [shape: f32[1,128], index: 6, kind: input, shape index: {}]
  %s7 = inlined_call_operand.vmem [shape: f32[8,128], index: 7, kind: output, shape index: {}]
  %s8 = sld [smem:[#allocation0]]
  $region38: #{p3_classifier_forward.3} parent=0
    _
  %s10 = ssub.s32 1, %s8
  %s11 = scalar_select 0, %s10, %s8
  // Predicated region
  $region2: #{p3_classifier_forward.3} parent=0 // pred_check
    _
  $region3: #{p3_classifier_forward.3} parent=0 // pred_check_branch
    %13 = sbr.rel (0) target = $region5
  $region4: #{p3_classifier_forward.3} parent=0 // pred_region
    _
  $region5: #{p3_classifier_forward.3} parent=0 // pred_fallthru
    _
  // Predicated region
  $region6: #{p3_classifier_forward.3} parent=0 // pred_check
    _
  $region7: #{p3_classifier_forward.3} parent=0 // pred_check_branch
    %15 = sbr.rel (0) target = $region9
  $region8: #{p3_classifier_forward.3} parent=0 // pred_region
    _
  $region9: #{p3_classifier_forward.3} parent=0 // pred_fallthru
    _
  // Predicated region
  $region10: #{p3_classifier_forward.3} parent=0 // pred_check
    _
  $region11: #{p3_classifier_forward.3} parent=0 // pred_check_branch
    %17 = sbr.rel (0) target = $region13
  $region12: #{p3_classifier_forward.3} parent=0 // pred_region
    _
  $region13: #{p3_classifier_forward.3} parent=0 // pred_fallthru
    _
  // Predicated region
  $region14: #{p3_classifier_forward.3} parent=0 // pred_check
    _
  $region15: #{p3_classifier_forward.3} parent=0 // pred_check_branch
    %19 = sbr.rel (0) target = $region17
  $region16: #{p3_classifier_forward.3} parent=0 // pred_region
    _
  $region17: #{p3_classifier_forward.3} parent=0 // pred_fallthru
    _
  // Predicated region
  $region18: #{p3_classifier_forward.3} parent=0 // pred_check
    _
  $region19: #{p3_classifier_forward.3} parent=0 // pred_check_branch
    %21 = sbr.rel (0) target = $region21
  $region20: #{p3_classifier_forward.3} parent=0 // pred_region
    _
  $region21: #{p3_classifier_forward.3} parent=0 // pred_fallthru
    _
  // Predicated region
  $region22: #{p3_classifier_forward.3} parent=0 // pred_check
    _
  $region23: #{p3_classifier_forward.3} parent=0 // pred_check_branch
    %23 = sbr.rel (0) target = $region25
  $region24: #{p3_classifier_forward.3} parent=0 // pred_region
    _
  $region25: #{p3_classifier_forward.3} parent=0 // pred_fallthru
    _
  // Predicated region
  $region26: #{p3_classifier_forward.3} parent=0 // pred_check
    _
  $region27: #{p3_classifier_forward.3} parent=0 // pred_check_branch
    %25 = sbr.rel (0) target = $region29
  $region28: #{p3_classifier_forward.3} parent=0 // pred_region
    _
  $region29: #{p3_classifier_forward.3} parent=0 // pred_fallthru
    _
  %v26 = vld [vmem:[%s0] sm:$0xff]
  %v27 = vld [vmem:[%s0 + $0x8] sm:$0xff]
  %v28 = vld [vmem:[%s1] sm:$0xff]
  %v29 = vld [vmem:[%s1 + $0x8] sm:$0xff]
  %v30 = vld [vmem:[%s1 + $0x10] sm:$0xff]
  %v31 = vld [vmem:[%s1 + $0x18] sm:$0xff]
  %v32 = vld [vmem:[%s1 + $0x20] sm:$0xff]
  %v33 = vld [vmem:[%s1 + $0x28] sm:$0xff]
  %v34 = vld [vmem:[%s1 + $0x30] sm:$0xff]
  %v35 = vld [vmem:[%s1 + $0x38] sm:$0xff]
  %v36 = vld [vmem:[%s1 + $0x40] sm:$0xff]
  %v37 = vld [vmem:[%s1 + $0x48] sm:$0xff]
  %v38 = vld [vmem:[%s1 + $0x50] sm:$0xff]
  %v39 = vld [vmem:[%s1 + $0x58] sm:$0xff]
  %v40 = vld [vmem:[%s1 + $0x60] sm:$0xff]
  %v41 = vld [vmem:[%s1 + $0x68] sm:$0xff]
  %v42 = vld [vmem:[%s1 + $0x70] sm:$0xff]
  %v43 = vld [vmem:[%s1 + $0x78] sm:$0xff]
  %v44 = vld [vmem:[%s1 + $0x80] sm:$0xff]
  %v45 = vld [vmem:[%s1 + $0x88] sm:$0xff]
  %v46 = vld [vmem:[%s1 + $0x90] sm:$0xff]
  %v47 = vld [vmem:[%s1 + $0x98] sm:$0xff]
  %v48 = vld [vmem:[%s1 + $0xa0] sm:$0xff]
  %v49 = vld [vmem:[%s1 + $0xa8] sm:$0xff]
  %v50 = vld [vmem:[%s1 + $0xb0] sm:$0xff]
  %v51 = vld [vmem:[%s1 + $0xb8] sm:$0xff]
  %v52 = vld [vmem:[%s1 + $0xc0] sm:$0xff]
  %v53 = vld [vmem:[%s1 + $0xc8] sm:$0xff]
  %v54 = vld [vmem:[%s1 + $0xd0] sm:$0xff]
  %v55 = vld [vmem:[%s1 + $0xd8] sm:$0xff]
  %v56 = vld [vmem:[%s1 + $0xe0] sm:$0xff]
  %v57 = vld [vmem:[%s1 + $0xe8] sm:$0xff]
  %v58 = vld [vmem:[%s1 + $0xf0] sm:$0xff]
  %v59 = vld [vmem:[%s1 + $0xf8] sm:$0xff]
  %v60 = vld [vmem:[%s1 + $0x100] sm:$0xff]
  %v61 = vld [vmem:[%s1 + $0x108] sm:$0xff]
  %v62 = vld [vmem:[%s1 + $0x110] sm:$0xff]
  %v63 = vld [vmem:[%s1 + $0x118] sm:$0xff]
  %v64 = vld [vmem:[%s1 + $0x120] sm:$0xff]
  %v65 = vld [vmem:[%s1 + $0x128] sm:$0xff]
  %v66 = vld [vmem:[%s1 + $0x130] sm:$0xff]
  %v67 = vld [vmem:[%s1 + $0x138] sm:$0xff]
  %v68 = vld [vmem:[%s1 + $0x140] sm:$0xff]
  %v69 = vld [vmem:[%s1 + $0x148] sm:$0xff]
  %v70 = vld [vmem:[%s1 + $0x150] sm:$0xff]
  %v71 = vld [vmem:[%s1 + $0x158] sm:$0xff]
  %v72 = vld [vmem:[%s1 + $0x160] sm:$0xff]
  %v73 = vld [vmem:[%s1 + $0x168] sm:$0xff]
  %v74 = vld [vmem:[%s1 + $0x170] sm:$0xff]
  %v75 = vld [vmem:[%s1 + $0x178] sm:$0xff]
  %v76 = vld [vmem:[%s1 + $0x180] sm:$0xff]
  %v77 = vld [vmem:[%s1 + $0x188] sm:$0xff]
  %v78 = vld [vmem:[%s1 + $0x190] sm:$0xff]
  %v79 = vld [vmem:[%s1 + $0x198] sm:$0xff]
  %v80 = vld [vmem:[%s1 + $0x1a0] sm:$0xff]
  %v81 = vld [vmem:[%s1 + $0x1a8] sm:$0xff]
  %v82 = vld [vmem:[%s1 + $0x1b0] sm:$0xff]
  %v83 = vld [vmem:[%s1 + $0x1b8] sm:$0xff]
  %v84 = vld [vmem:[%s1 + $0x1c0] sm:$0xff]
  %v85 = vld [vmem:[%s1 + $0x1c8] sm:$0xff]
  %v86 = vld [vmem:[%s1 + $0x1d0] sm:$0xff]
  %v87 = vld [vmem:[%s1 + $0x1d8] sm:$0xff]
  %v88 = vld [vmem:[%s1 + $0x1e0] sm:$0xff]
  %v89 = vld [vmem:[%s1 + $0x1e8] sm:$0xff]
  %v90 = vld [vmem:[%s1 + $0x1f0] sm:$0xff]
  %v91 = vld [vmem:[%s1 + $0x1f8] sm:$0xff]
  %v92 = vld [vmem:[%s1 + $0x200] sm:$0xff]
  %v93 = vld [vmem:[%s1 + $0x208] sm:$0xff]
  %v94 = vld [vmem:[%s1 + $0x210] sm:$0xff]
  %v95 = vld [vmem:[%s1 + $0x218] sm:$0xff]
  %v96 = vld [vmem:[%s1 + $0x220] sm:$0xff]
  %v97 = vld [vmem:[%s1 + $0x228] sm:$0xff]
  %v98 = vld [vmem:[%s1 + $0x230] sm:$0xff]
  %v99 = vld [vmem:[%s1 + $0x238] sm:$0xff]
  %v100 = vld [vmem:[%s1 + $0x240] sm:$0xff]
  %v101 = vld [vmem:[%s1 + $0x248] sm:$0xff]
  %v102 = vld [vmem:[%s1 + $0x250] sm:$0xff]
  %v103 = vld [vmem:[%s1 + $0x258] sm:$0xff]
  %v104 = vld [vmem:[%s1 + $0x260] sm:$0xff]
  %v105 = vld [vmem:[%s1 + $0x268] sm:$0xff]
  %v106 = vld [vmem:[%s1 + $0x270] sm:$0xff]
  %v107 = vld [vmem:[%s1 + $0x278] sm:$0xff]
  %v108 = vld [vmem:[%s1 + $0x280] sm:$0xff]
  %v109 = vld [vmem:[%s1 + $0x288] sm:$0xff]
  %v110 = vld [vmem:[%s1 + $0x290] sm:$0xff]
  %v111 = vld [vmem:[%s1 + $0x298] sm:$0xff]
  %v112 = vld [vmem:[%s1 + $0x2a0] sm:$0xff]
  %v113 = vld [vmem:[%s1 + $0x2a8] sm:$0xff]
  %v114 = vld [vmem:[%s1 + $0x2b0] sm:$0xff]
  %v115 = vld [vmem:[%s1 + $0x2b8] sm:$0xff]
  %v116 = vld [vmem:[%s1 + $0x2c0] sm:$0xff]
  %v117 = vld [vmem:[%s1 + $0x2c8] sm:$0xff]
  %v118 = vld [vmem:[%s1 + $0x2d0] sm:$0xff]
  %v119 = vld [vmem:[%s1 + $0x2d8] sm:$0xff]
  %v120 = vld [vmem:[%s1 + $0x2e0] sm:$0xff]
  %v121 = vld [vmem:[%s1 + $0x2e8] sm:$0xff]
  %v122 = vld [vmem:[%s1 + $0x2f0] sm:$0xff]
  %v123 = vld [vmem:[%s1 + $0x2f8] sm:$0xff]
  %v124 = vld [vmem:[%s1 + $0x300] sm:$0xff]
  %v125 = vld [vmem:[%s1 + $0x308] sm:$0xff]
  %v126 = vld [vmem:[%s1 + $0x310] sm:$0xff]
  %v127 = vld [vmem:[%s1 + $0x318] sm:$0xff]
  %v128 = vld [vmem:[%s1 + $0x320] sm:$0xff]
  %v129 = vld [vmem:[%s1 + $0x328] sm:$0xff]
  %v130 = vld [vmem:[%s1 + $0x330] sm:$0xff]
  %v131 = vld [vmem:[%s1 + $0x338] sm:$0xff]
  %v132 = vld [vmem:[%s1 + $0x340] sm:$0xff]
  %v133 = vld [vmem:[%s1 + $0x348] sm:$0xff]
  %v134 = vld [vmem:[%s1 + $0x350] sm:$0xff]
  %v135 = vld [vmem:[%s1 + $0x358] sm:$0xff]
  %v136 = vld [vmem:[%s1 + $0x360] sm:$0xff]
  %v137 = vld [vmem:[%s1 + $0x368] sm:$0xff]
  %v138 = vld [vmem:[%s1 + $0x370] sm:$0xff]
  %v139 = vld [vmem:[%s1 + $0x378] sm:$0xff]
  %v140 = vld [vmem:[%s1 + $0x380] sm:$0xff]
  %v141 = vld [vmem:[%s1 + $0x388] sm:$0xff]
  %v142 = vld [vmem:[%s1 + $0x390] sm:$0xff]
  %v143 = vld [vmem:[%s1 + $0x398] sm:$0xff]
  %v144 = vld [vmem:[%s1 + $0x3a0] sm:$0xff]
  %v145 = vld [vmem:[%s1 + $0x3a8] sm:$0xff]
  %v146 = vld [vmem:[%s1 + $0x3b0] sm:$0xff]
  %v147 = vld [vmem:[%s1 + $0x3b8] sm:$0xff]
  %v148 = vld [vmem:[%s1 + $0x3c0] sm:$0xff]
  %v149 = vld [vmem:[%s1 + $0x3c8] sm:$0xff]
  %v150 = vld [vmem:[%s1 + $0x3d0] sm:$0xff]
  %v151 = vld [vmem:[%s1 + $0x3d8] sm:$0xff]
  %v152 = vld [vmem:[%s1 + $0x3e0] sm:$0xff]
  %v153 = vld [vmem:[%s1 + $0x3e8] sm:$0xff]
  %v154 = vld [vmem:[%s1 + $0x3f0] sm:$0xff]
  %v155 = vld [vmem:[%s1 + $0x3f8] sm:$0xff]
  %v156 = vld [vmem:[%s1 + $0x400] sm:$0xff]
  %v157 = vld [vmem:[%s1 + $0x408] sm:$0xff]
  %v158 = vld [vmem:[%s1 + $0x410] sm:$0xff]
  %v159 = vld [vmem:[%s1 + $0x418] sm:$0xff]
  %v160 = vld [vmem:[%s1 + $0x420] sm:$0xff]
  %v161 = vld [vmem:[%s1 + $0x428] sm:$0xff]
  %v162 = vld [vmem:[%s1 + $0x430] sm:$0xff]
  %v163 = vld [vmem:[%s1 + $0x438] sm:$0xff]
  %v164 = vld [vmem:[%s1 + $0x440] sm:$0xff]
  %v165 = vld [vmem:[%s1 + $0x448] sm:$0xff]
  %v166 = vld [vmem:[%s1 + $0x450] sm:$0xff]
  %v167 = vld [vmem:[%s1 + $0x458] sm:$0xff]
  %v168 = vld [vmem:[%s1 + $0x460] sm:$0xff]
  %v169 = vld [vmem:[%s1 + $0x468] sm:$0xff]
  %v170 = vld [vmem:[%s1 + $0x470] sm:$0xff]
  %v171 = vld [vmem:[%s1 + $0x478] sm:$0xff]
  %v172 = vld [vmem:[%s1 + $0x480] sm:$0xff]
  %v173 = vld [vmem:[%s1 + $0x488] sm:$0xff]
  %v174 = vld [vmem:[%s1 + $0x490] sm:$0xff]
  %v175 = vld [vmem:[%s1 + $0x498] sm:$0xff]
  %v176 = vld [vmem:[%s1 + $0x4a0] sm:$0xff]
  %v177 = vld [vmem:[%s1 + $0x4a8] sm:$0xff]
  %v178 = vld [vmem:[%s1 + $0x4b0] sm:$0xff]
  %v179 = vld [vmem:[%s1 + $0x4b8] sm:$0xff]
  %v180 = vld [vmem:[%s1 + $0x4c0] sm:$0xff]
  %v181 = vld [vmem:[%s1 + $0x4c8] sm:$0xff]
  %v182 = vld [vmem:[%s1 + $0x4d0] sm:$0xff]
  %v183 = vld [vmem:[%s1 + $0x4d8] sm:$0xff]
  %v184 = vld [vmem:[%s1 + $0x4e0] sm:$0xff]
  %v185 = vld [vmem:[%s1 + $0x4e8] sm:$0xff]
  %v186 = vld [vmem:[%s1 + $0x4f0] sm:$0xff]
  %v187 = vld [vmem:[%s1 + $0x4f8] sm:$0xff]
  %v188 = vld [vmem:[%s1 + $0x500] sm:$0xff]
  %v189 = vld [vmem:[%s1 + $0x508] sm:$0xff]
  %v190 = vld [vmem:[%s1 + $0x510] sm:$0xff]
  %v191 = vld [vmem:[%s1 + $0x518] sm:$0xff]
  %v192 = vld [vmem:[%s1 + $0x520] sm:$0xff]
  %v193 = vld [vmem:[%s1 + $0x528] sm:$0xff]
  %v194 = vld [vmem:[%s1 + $0x530] sm:$0xff]
  %v195 = vld [vmem:[%s1 + $0x538] sm:$0xff]
  %v196 = vld [vmem:[%s1 + $0x540] sm:$0xff]
  %v197 = vld [vmem:[%s1 + $0x548] sm:$0xff]
  %v198 = vld [vmem:[%s1 + $0x550] sm:$0xff]
  %v199 = vld [vmem:[%s1 + $0x558] sm:$0xff]
  %v200 = vld [vmem:[%s1 + $0x560] sm:$0xff]
  %v201 = vld [vmem:[%s1 + $0x568] sm:$0xff]
  %v202 = vld [vmem:[%s1 + $0x570] sm:$0xff]
  %v203 = vld [vmem:[%s1 + $0x578] sm:$0xff]
  %v204 = vld [vmem:[%s1 + $0x580] sm:$0xff]
  %v205 = vld [vmem:[%s1 + $0x588] sm:$0xff]
  %v206 = vld [vmem:[%s1 + $0x590] sm:$0xff]
  %v207 = vld [vmem:[%s1 + $0x598] sm:$0xff]
  %v208 = vld [vmem:[%s1 + $0x5a0] sm:$0xff]
  %v209 = vld [vmem:[%s1 + $0x5a8] sm:$0xff]
  %v210 = vld [vmem:[%s1 + $0x5b0] sm:$0xff]
  %v211 = vld [vmem:[%s1 + $0x5b8] sm:$0xff]
  %v212 = vld [vmem:[%s1 + $0x5c0] sm:$0xff]
  %v213 = vld [vmem:[%s1 + $0x5c8] sm:$0xff]
  %v214 = vld [vmem:[%s1 + $0x5d0] sm:$0xff]
  %v215 = vld [vmem:[%s1 + $0x5d8] sm:$0xff]
  %v216 = vld [vmem:[%s1 + $0x5e0] sm:$0xff]
  %v217 = vld [vmem:[%s1 + $0x5e8] sm:$0xff]
  %v218 = vld [vmem:[%s1 + $0x5f0] sm:$0xff]
  %v219 = vld [vmem:[%s1 + $0x5f8] sm:$0xff]
  %v220 = vld [vmem:[%s2] sm:$0x3f]
  %v222 = vlaneseq
  %v223 = vshrl.u32 %v222, 7
  %v224 = vsub.s32 0, %v223
  %v225 = vrot.slane %v220, %v224
  %v226 = vlaneseq
  %v227 = vshrl.u32 %v226, 7
  %v228 = vsub.s32 1, %v227
  %v229 = vrot.slane %v220, %v228
  %v230 = vlaneseq
  %v231 = vshrl.u32 %v230, 7
  %v232 = vsub.s32 2, %v231
  %v233 = vrot.slane %v220, %v232
  %v234 = vlaneseq
  %v235 = vshrl.u32 %v234, 7
  %v236 = vsub.s32 3, %v235
  %v237 = vrot.slane %v220, %v236
  %v238 = vlaneseq
  %v239 = vshrl.u32 %v238, 7
  %v240 = vsub.s32 4, %v239
  %v241 = vrot.slane %v220, %v240
  %v242 = vlaneseq
  %v243 = vshrl.u32 %v242, 7
  %v244 = vsub.s32 5, %v243
  %v245 = vrot.slane %v220, %v244
  %252 = vmatprep.subr.mxu0 %v29
  %253 = vmatpush1.msra.mxu0 %v28
  %254 = vmatprep.subr.mxu0 %v35
  %255 = vmatpush1.msra.mxu0 %v34
  %256 = vmatprep.subr.mxu0 %v41
  %257 = vmatpush1.msra.mxu0 %v40
  %258 = vmatprep.subr.mxu0 %v47
  %259 = vmatpush1.msra.mxu0 %v46
  %260 = vmatprep.subr.mxu0 %v53
  %261 = vmatpush1.msra.mxu0 %v52
  %262 = vmatprep.subr.mxu0 %v59
  %263 = vmatpush1.msra.mxu0 %v58
  %264 = vmatprep.subr.mxu0 %v65
  %265 = vmatpush1.msra.mxu0 %v64
  %266 = vmatprep.subr.mxu0 %v71
  %267 = vmatpush1.msra.mxu0 %v70
  %268 = vmatprep.subr.mxu0 %v77
  %269 = vmatpush1.msra.mxu0 %v76
  %270 = vmatprep.subr.mxu0 %v83
  %271 = vmatpush1.msra.mxu0 %v82
  %272 = vmatprep.subr.mxu0 %v89
  %273 = vmatpush1.msra.mxu0 %v88
  %274 = vmatprep.subr.mxu0 %v95
  %275 = vmatpush1.msra.mxu0 %v94
  %276 = vmatprep.subr.mxu0 %v101
  %277 = vmatpush1.msra.mxu0 %v100
  %278 = vmatprep.subr.mxu0 %v107
  %279 = vmatpush1.msra.mxu0 %v106
  %280 = vmatprep.subr.mxu0 %v113
  %281 = vmatpush1.msra.mxu0 %v112
  %282 = vmatprep.subr.mxu0 %v119
  %283 = vmatpush1.msra.mxu0 %v118
  %284 = vmatprep.subr.mxu0 %v125
  %285 = vmatpush1.msra.mxu0 %v124
  %286 = vmatprep.subr.mxu0 %v131
  %287 = vmatpush1.msra.mxu0 %v130
  %288 = vmatprep.subr.mxu0 %v137
  %289 = vmatpush1.msra.mxu0 %v136
  %290 = vmatprep.subr.mxu0 %v143
  %291 = vmatpush1.msra.mxu0 %v142
  %292 = vmatprep.subr.mxu0 %v149
  %293 = vmatpush1.msra.mxu0 %v148
  %294 = vmatprep.subr.mxu0 %v155
  %295 = vmatpush1.msra.mxu0 %v154
  %296 = vmatprep.subr.mxu0 %v161
  %297 = vmatpush1.msra.mxu0 %v160
  %298 = vmatprep.subr.mxu0 %v167
  %299 = vmatpush1.msra.mxu0 %v166
  %300 = vmatprep.subr.mxu0 %v173
  %301 = vmatpush1.msra.mxu0 %v172
  %302 = vmatprep.subr.mxu0 %v179
  %303 = vmatpush1.msra.mxu0 %v178
  %304 = vmatprep.subr.mxu0 %v185
  %305 = vmatpush1.msra.mxu0 %v184
  %306 = vmatprep.subr.mxu0 %v191
  %307 = vmatpush1.msra.mxu0 %v190
  %308 = vmatprep.subr.mxu0 %v197
  %309 = vmatpush1.msra.mxu0 %v196
  %310 = vmatprep.subr.mxu0 %v203
  %311 = vmatpush1.msra.mxu0 %v202
  %312 = vmatprep.subr.mxu0 %v209
  %313 = vmatpush1.msra.mxu0 %v208
  %314 = vmatprep.subr.mxu0 %v215
  %315 = vmatpush1.msra.mxu0 %v214
  %316 = vmatprep.mubr.f32.mxu0 %v27
  %317 = vmatmul.mubr.f32.gmra.mrb[0].mxu0 %v26
  %v318 = vpop.f32.mrb[0].mxu0
  %v319 = vadd.f32 %v225, %v318
  %v320 = vpop.f32.mrb[0].mxu0
  %v321 = vadd.f32 %v229, %v320
  %322 = vdwg.mxu0
  %323 = vmatprep.subr.mxu0 %v31
  %324 = vmatpush1.msra.mxu0 %v30
  %325 = vmatprep.subr.mxu0 %v37
  %326 = vmatpush1.msra.mxu0 %v36
  %327 = vmatprep.subr.mxu0 %v43
  %328 = vmatpush1.msra.mxu0 %v42
  %329 = vmatprep.subr.mxu0 %v49
  %330 = vmatpush1.msra.mxu0 %v48
  %331 = vmatprep.subr.mxu0 %v55
  %332 = vmatpush1.msra.mxu0 %v54
  %333 = vmatprep.subr.mxu0 %v61
  %334 = vmatpush1.msra.mxu0 %v60
  %335 = vmatprep.subr.mxu0 %v67
  %336 = vmatpush1.msra.mxu0 %v66
  %337 = vmatprep.subr.mxu0 %v73
  %338 = vmatpush1.msra.mxu0 %v72
  %339 = vmatprep.subr.mxu0 %v79
  %340 = vmatpush1.msra.mxu0 %v78
  %341 = vmatprep.subr.mxu0 %v85
  %342 = vmatpush1.msra.mxu0 %v84
  %343 = vmatprep.subr.mxu0 %v91
  %344 = vmatpush1.msra.mxu0 %v90
  %345 = vmatprep.subr.mxu0 %v97
  %346 = vmatpush1.msra.mxu0 %v96
  %347 = vmatprep.subr.mxu0 %v103
  %348 = vmatpush1.msra.mxu0 %v102
  %349 = vmatprep.subr.mxu0 %v109
  %350 = vmatpush1.msra.mxu0 %v108
  %351 = vmatprep.subr.mxu0 %v115
  %352 = vmatpush1.msra.mxu0 %v114
  %353 = vmatprep.subr.mxu0 %v121
  %354 = vmatpush1.msra.mxu0 %v120
  %355 = vmatprep.subr.mxu0 %v127
  %356 = vmatpush1.msra.mxu0 %v126
  %357 = vmatprep.subr.mxu0 %v133
  %358 = vmatpush1.msra.mxu0 %v132
  %359 = vmatprep.subr.mxu0 %v139
  %360 = vmatpush1.msra.mxu0 %v138
  %361 = vmatprep.subr.mxu0 %v145
  %362 = vmatpush1.msra.mxu0 %v144
  %363 = vmatprep.subr.mxu0 %v151
  %364 = vmatpush1.msra.mxu0 %v150
  %365 = vmatprep.subr.mxu0 %v157
  %366 = vmatpush1.msra.mxu0 %v156
  %367 = vmatprep.subr.mxu0 %v163
  %368 = vmatpush1.msra.mxu0 %v162
  %369 = vmatprep.subr.mxu0 %v169
  %370 = vmatpush1.msra.mxu0 %v168
  %371 = vmatprep.subr.mxu0 %v175
  %372 = vmatpush1.msra.mxu0 %v174
  %373 = vmatprep.subr.mxu0 %v181
  %374 = vmatpush1.msra.mxu0 %v180
  %375 = vmatprep.subr.mxu0 %v187
  %376 = vmatpush1.msra.mxu0 %v186
  %377 = vmatprep.subr.mxu0 %v193
  %378 = vmatpush1.msra.mxu0 %v192
  %379 = vmatprep.subr.mxu0 %v199
  %380 = vmatpush1.msra.mxu0 %v198
  %381 = vmatprep.subr.mxu0 %v205
  %382 = vmatpush1.msra.mxu0 %v204
  %383 = vmatprep.subr.mxu0 %v211
  %384 = vmatpush1.msra.mxu0 %v210
  %385 = vmatprep.subr.mxu0 %v217
  %386 = vmatpush1.msra.mxu0 %v216
  %387 = vmatprep.mubr.f32.mxu0 %v27
  %388 = vmatmul.mubr.f32.gmra.mrb[0].mxu0 %v26
  %v389 = vpop.f32.mrb[0].mxu0
  %v390 = vadd.f32 %v233, %v389
  %v391 = vpop.f32.mrb[0].mxu0
  %v392 = vadd.f32 %v237, %v391
  %393 = vdwg.mxu0
  %394 = vmatprep.subr.mxu0 %v33
  %395 = vmatpush1.msra.mxu0 %v32
  %396 = vmatprep.subr.mxu0 %v39
  %397 = vmatpush1.msra.mxu0 %v38
  %398 = vmatprep.subr.mxu0 %v45
  %399 = vmatpush1.msra.mxu0 %v44
  %400 = vmatprep.subr.mxu0 %v51
  %401 = vmatpush1.msra.mxu0 %v50
  %402 = vmatprep.subr.mxu0 %v57
  %403 = vmatpush1.msra.mxu0 %v56
  %404 = vmatprep.subr.mxu0 %v63
  %405 = vmatpush1.msra.mxu0 %v62
  %406 = vmatprep.subr.mxu0 %v69
  %407 = vmatpush1.msra.mxu0 %v68
  %408 = vmatprep.subr.mxu0 %v75
  %409 = vmatpush1.msra.mxu0 %v74
  %410 = vmatprep.subr.mxu0 %v81
  %411 = vmatpush1.msra.mxu0 %v80
  %412 = vmatprep.subr.mxu0 %v87
  %413 = vmatpush1.msra.mxu0 %v86
  %414 = vmatprep.subr.mxu0 %v93
  %415 = vmatpush1.msra.mxu0 %v92
  %416 = vmatprep.subr.mxu0 %v99
  %417 = vmatpush1.msra.mxu0 %v98
  %418 = vmatprep.subr.mxu0 %v105
  %419 = vmatpush1.msra.mxu0 %v104
  %420 = vmatprep.subr.mxu0 %v111
  %421 = vmatpush1.msra.mxu0 %v110
  %422 = vmatprep.subr.mxu0 %v117
  %423 = vmatpush1.msra.mxu0 %v116
  %424 = vmatprep.subr.mxu0 %v123
  %425 = vmatpush1.msra.mxu0 %v122
  %426 = vmatprep.subr.mxu0 %v129
  %427 = vmatpush1.msra.mxu0 %v128
  %428 = vmatprep.subr.mxu0 %v135
  %429 = vmatpush1.msra.mxu0 %v134
  %430 = vmatprep.subr.mxu0 %v141
  %431 = vmatpush1.msra.mxu0 %v140
  %432 = vmatprep.subr.mxu0 %v147
  %433 = vmatpush1.msra.mxu0 %v146
  %434 = vmatprep.subr.mxu0 %v153
  %435 = vmatpush1.msra.mxu0 %v152
  %436 = vmatprep.subr.mxu0 %v159
  %437 = vmatpush1.msra.mxu0 %v158
  %438 = vmatprep.subr.mxu0 %v165
  %439 = vmatpush1.msra.mxu0 %v164
  %440 = vmatprep.subr.mxu0 %v171
  %441 = vmatpush1.msra.mxu0 %v170
  %442 = vmatprep.subr.mxu0 %v177
  %443 = vmatpush1.msra.mxu0 %v176
  %444 = vmatprep.subr.mxu0 %v183
  %445 = vmatpush1.msra.mxu0 %v182
  %446 = vmatprep.subr.mxu0 %v189
  %447 = vmatpush1.msra.mxu0 %v188
  %448 = vmatprep.subr.mxu0 %v195
  %449 = vmatpush1.msra.mxu0 %v194
  %450 = vmatprep.subr.mxu0 %v201
  %451 = vmatpush1.msra.mxu0 %v200
  %452 = vmatprep.subr.mxu0 %v207
  %453 = vmatpush1.msra.mxu0 %v206
  %454 = vmatprep.subr.mxu0 %v213
  %455 = vmatpush1.msra.mxu0 %v212
  %456 = vmatprep.subr.mxu0 %v219
  %457 = vmatpush1.msra.mxu0 %v218
  %458 = vmatprep.mubr.f32.mxu0 %v27
  %459 = vmatmul.mubr.f32.gmra.mrb[0].mxu0 %v26
  %v460 = vpop.f32.mrb[0].mxu0
  %v461 = vadd.f32 %v241, %v460
  %v462 = vpop.f32.mrb[0].mxu0
  %v463 = vadd.f32 %v245, %v462
  %464 = vdwg.mxu0
  %v465 = vld [vmem:[%s3] sm:$0xff]
  %v466 = vld [vmem:[%s3 + $0x8] sm:$0xff]
  %v467 = vld [vmem:[%s3 + $0x10] sm:$0xff]
  %v468 = vld [vmem:[%s3 + $0x18] sm:$0xff]
  %v469 = vld [vmem:[%s3 + $0x20] sm:$0xff]
  %v470 = vld [vmem:[%s3 + $0x28] sm:$0xff]
  %v471 = vld [vmem:[%s3 + $0x30] sm:$0xff]
  %v472 = vld [vmem:[%s3 + $0x38] sm:$0xff]
  %v473 = vld [vmem:[%s3 + $0x40] sm:$0xff]
  %v474 = vld [vmem:[%s3 + $0x48] sm:$0xff]
  %v475 = vld [vmem:[%s3 + $0x50] sm:$0xff]
  %v476 = vld [vmem:[%s3 + $0x58] sm:$0xff]
  %v477 = vld [vmem:[%s3 + $0x60] sm:$0xff]
  %v478 = vld [vmem:[%s3 + $0x68] sm:$0xff]
  %v479 = vld [vmem:[%s3 + $0x70] sm:$0xff]
  %v480 = vld [vmem:[%s3 + $0x78] sm:$0xff]
  %v481 = vld [vmem:[%s3 + $0x80] sm:$0xff]
  %v482 = vld [vmem:[%s3 + $0x88] sm:$0xff]
  %v483 = vld [vmem:[%s3 + $0x90] sm:$0xff]
  %v484 = vld [vmem:[%s3 + $0x98] sm:$0xff]
  %v485 = vld [vmem:[%s3 + $0xa0] sm:$0xff]
  %v486 = vld [vmem:[%s3 + $0xa8] sm:$0xff]
  %v487 = vld [vmem:[%s3 + $0xb0] sm:$0xff]
  %v488 = vld [vmem:[%s3 + $0xb8] sm:$0xff]
  %v489 = vld [vmem:[%s3 + $0xc0] sm:$0xff]
  %v490 = vld [vmem:[%s3 + $0xc8] sm:$0xff]
  %v491 = vld [vmem:[%s3 + $0xd0] sm:$0xff]
  %v492 = vld [vmem:[%s3 + $0xd8] sm:$0xff]
  %v493 = vld [vmem:[%s3 + $0xe0] sm:$0xff]
  %v494 = vld [vmem:[%s3 + $0xe8] sm:$0xff]
  %v495 = vld [vmem:[%s3 + $0xf0] sm:$0xff]
  %v496 = vld [vmem:[%s3 + $0xf8] sm:$0xff]
  %v497 = vld [vmem:[%s3 + $0x100] sm:$0xff]
  %v498 = vld [vmem:[%s3 + $0x108] sm:$0xff]
  %v499 = vld [vmem:[%s3 + $0x110] sm:$0xff]
  %v500 = vld [vmem:[%s3 + $0x118] sm:$0xff]
  %v501 = vld [vmem:[%s3 + $0x120] sm:$0xff]
  %v502 = vld [vmem:[%s3 + $0x128] sm:$0xff]
  %v503 = vld [vmem:[%s3 + $0x130] sm:$0xff]
  %v504 = vld [vmem:[%s3 + $0x138] sm:$0xff]
  %v505 = vld [vmem:[%s3 + $0x140] sm:$0xff]
  %v506 = vld [vmem:[%s3 + $0x148] sm:$0xff]
  %v507 = vld [vmem:[%s3 + $0x150] sm:$0xff]
  %v508 = vld [vmem:[%s3 + $0x158] sm:$0xff]
  %v509 = vld [vmem:[%s3 + $0x160] sm:$0xff]
  %v510 = vld [vmem:[%s3 + $0x168] sm:$0xff]
  %v511 = vld [vmem:[%s3 + $0x170] sm:$0xff]
  %v512 = vld [vmem:[%s3 + $0x178] sm:$0xff]
  %v513 = vld [vmem:[%s3 + $0x180] sm:$0xff]
  %v514 = vld [vmem:[%s3 + $0x188] sm:$0xff]
  %v515 = vld [vmem:[%s3 + $0x190] sm:$0xff]
  %v516 = vld [vmem:[%s3 + $0x198] sm:$0xff]
  %v517 = vld [vmem:[%s3 + $0x1a0] sm:$0xff]
  %v518 = vld [vmem:[%s3 + $0x1a8] sm:$0xff]
  %v519 = vld [vmem:[%s3 + $0x1b0] sm:$0xff]
  %v520 = vld [vmem:[%s3 + $0x1b8] sm:$0xff]
  %v521 = vld [vmem:[%s3 + $0x1c0] sm:$0xff]
  %v522 = vld [vmem:[%s3 + $0x1c8] sm:$0xff]
  %v523 = vld [vmem:[%s3 + $0x1d0] sm:$0xff]
  %v524 = vld [vmem:[%s3 + $0x1d8] sm:$0xff]
  %v525 = vld [vmem:[%s3 + $0x1e0] sm:$0xff]
  %v526 = vld [vmem:[%s3 + $0x1e8] sm:$0xff]
  %v527 = vld [vmem:[%s3 + $0x1f0] sm:$0xff]
  %v528 = vld [vmem:[%s3 + $0x1f8] sm:$0xff]
  %v529 = vld [vmem:[%s3 + $0x200] sm:$0xff]
  %v530 = vld [vmem:[%s3 + $0x208] sm:$0xff]
  %v531 = vld [vmem:[%s3 + $0x210] sm:$0xff]
  %v532 = vld [vmem:[%s3 + $0x218] sm:$0xff]
  %v533 = vld [vmem:[%s3 + $0x220] sm:$0xff]
  %v534 = vld [vmem:[%s3 + $0x228] sm:$0xff]
  %v535 = vld [vmem:[%s3 + $0x230] sm:$0xff]
  %v536 = vld [vmem:[%s3 + $0x238] sm:$0xff]
  %v537 = vld [vmem:[%s3 + $0x240] sm:$0xff]
  %v538 = vld [vmem:[%s3 + $0x248] sm:$0xff]
  %v539 = vld [vmem:[%s3 + $0x250] sm:$0xff]
  %v540 = vld [vmem:[%s3 + $0x258] sm:$0xff]
  %v541 = vld [vmem:[%s3 + $0x260] sm:$0xff]
  %v542 = vld [vmem:[%s3 + $0x268] sm:$0xff]
  %v543 = vld [vmem:[%s3 + $0x270] sm:$0xff]
  %v544 = vld [vmem:[%s3 + $0x278] sm:$0xff]
  %v545 = vld [vmem:[%s3 + $0x280] sm:$0xff]
  %v546 = vld [vmem:[%s3 + $0x288] sm:$0xff]
  %v547 = vld [vmem:[%s3 + $0x290] sm:$0xff]
  %v548 = vld [vmem:[%s3 + $0x298] sm:$0xff]
  %v549 = vld [vmem:[%s3 + $0x2a0] sm:$0xff]
  %v550 = vld [vmem:[%s3 + $0x2a8] sm:$0xff]
  %v551 = vld [vmem:[%s3 + $0x2b0] sm:$0xff]
  %v552 = vld [vmem:[%s3 + $0x2b8] sm:$0xff]
  %v553 = vld [vmem:[%s3 + $0x2c0] sm:$0xff]
  %v554 = vld [vmem:[%s3 + $0x2c8] sm:$0xff]
  %v555 = vld [vmem:[%s3 + $0x2d0] sm:$0xff]
  %v556 = vld [vmem:[%s3 + $0x2d8] sm:$0xff]
  %v557 = vld [vmem:[%s3 + $0x2e0] sm:$0xff]
  %v558 = vld [vmem:[%s3 + $0x2e8] sm:$0xff]
  %v559 = vld [vmem:[%s3 + $0x2f0] sm:$0xff]
  %v560 = vld [vmem:[%s3 + $0x2f8] sm:$0xff]
  %v561 = vld [vmem:[%s3 + $0x300] sm:$0xff]
  %v562 = vld [vmem:[%s3 + $0x308] sm:$0xff]
  %v563 = vld [vmem:[%s3 + $0x310] sm:$0xff]
  %v564 = vld [vmem:[%s3 + $0x318] sm:$0xff]
  %v565 = vld [vmem:[%s3 + $0x320] sm:$0xff]
  %v566 = vld [vmem:[%s3 + $0x328] sm:$0xff]
  %v567 = vld [vmem:[%s3 + $0x330] sm:$0xff]
  %v568 = vld [vmem:[%s3 + $0x338] sm:$0xff]
  %v569 = vld [vmem:[%s3 + $0x340] sm:$0xff]
  %v570 = vld [vmem:[%s3 + $0x348] sm:$0xff]
  %v571 = vld [vmem:[%s3 + $0x350] sm:$0xff]
  %v572 = vld [vmem:[%s3 + $0x358] sm:$0xff]
  %v573 = vld [vmem:[%s3 + $0x360] sm:$0xff]
  %v574 = vld [vmem:[%s3 + $0x368] sm:$0xff]
  %v575 = vld [vmem:[%s3 + $0x370] sm:$0xff]
  %v576 = vld [vmem:[%s3 + $0x378] sm:$0xff]
  %v577 = vld [vmem:[%s3 + $0x380] sm:$0xff]
  %v578 = vld [vmem:[%s3 + $0x388] sm:$0xff]
  %v579 = vld [vmem:[%s3 + $0x390] sm:$0xff]
  %v580 = vld [vmem:[%s3 + $0x398] sm:$0xff]
  %v581 = vld [vmem:[%s3 + $0x3a0] sm:$0xff]
  %v582 = vld [vmem:[%s3 + $0x3a8] sm:$0xff]
  %v583 = vld [vmem:[%s3 + $0x3b0] sm:$0xff]
  %v584 = vld [vmem:[%s3 + $0x3b8] sm:$0xff]
  %v585 = vld [vmem:[%s3 + $0x3c0] sm:$0xff]
  %v586 = vld [vmem:[%s3 + $0x3c8] sm:$0xff]
  %v587 = vld [vmem:[%s3 + $0x3d0] sm:$0xff]
  %v588 = vld [vmem:[%s3 + $0x3d8] sm:$0xff]
  %v589 = vld [vmem:[%s3 + $0x3e0] sm:$0xff]
  %v590 = vld [vmem:[%s3 + $0x3e8] sm:$0xff]
  %v591 = vld [vmem:[%s3 + $0x3f0] sm:$0xff]
  %v592 = vld [vmem:[%s3 + $0x3f8] sm:$0xff]
  %v593 = vld [vmem:[%s3 + $0x400] sm:$0xff]
  %v594 = vld [vmem:[%s3 + $0x408] sm:$0xff]
  %v595 = vld [vmem:[%s3 + $0x410] sm:$0xff]
  %v596 = vld [vmem:[%s3 + $0x418] sm:$0xff]
  %v597 = vld [vmem:[%s3 + $0x420] sm:$0xff]
  %v598 = vld [vmem:[%s3 + $0x428] sm:$0xff]
  %v599 = vld [vmem:[%s3 + $0x430] sm:$0xff]
  %v600 = vld [vmem:[%s3 + $0x438] sm:$0xff]
  %v601 = vld [vmem:[%s3 + $0x440] sm:$0xff]
  %v602 = vld [vmem:[%s3 + $0x448] sm:$0xff]
  %v603 = vld [vmem:[%s3 + $0x450] sm:$0xff]
  %v604 = vld [vmem:[%s3 + $0x458] sm:$0xff]
  %v605 = vld [vmem:[%s3 + $0x460] sm:$0xff]
  %v606 = vld [vmem:[%s3 + $0x468] sm:$0xff]
  %v607 = vld [vmem:[%s3 + $0x470] sm:$0xff]
  %v608 = vld [vmem:[%s3 + $0x478] sm:$0xff]
  %v609 = vld [vmem:[%s3 + $0x480] sm:$0xff]
  %v610 = vld [vmem:[%s3 + $0x488] sm:$0xff]
  %v611 = vld [vmem:[%s3 + $0x490] sm:$0xff]
  %v612 = vld [vmem:[%s3 + $0x498] sm:$0xff]
  %v613 = vld [vmem:[%s3 + $0x4a0] sm:$0xff]
  %v614 = vld [vmem:[%s3 + $0x4a8] sm:$0xff]
  %v615 = vld [vmem:[%s3 + $0x4b0] sm:$0xff]
  %v616 = vld [vmem:[%s3 + $0x4b8] sm:$0xff]
  %v617 = vld [vmem:[%s3 + $0x4c0] sm:$0xff]
  %v618 = vld [vmem:[%s3 + $0x4c8] sm:$0xff]
  %v619 = vld [vmem:[%s3 + $0x4d0] sm:$0xff]
  %v620 = vld [vmem:[%s3 + $0x4d8] sm:$0xff]
  %v621 = vld [vmem:[%s3 + $0x4e0] sm:$0xff]
  %v622 = vld [vmem:[%s3 + $0x4e8] sm:$0xff]
  %v623 = vld [vmem:[%s3 + $0x4f0] sm:$0xff]
  %v624 = vld [vmem:[%s3 + $0x4f8] sm:$0xff]
  %v625 = vld [vmem:[%s3 + $0x500] sm:$0xff]
  %v626 = vld [vmem:[%s3 + $0x508] sm:$0xff]
  %v627 = vld [vmem:[%s3 + $0x510] sm:$0xff]
  %v628 = vld [vmem:[%s3 + $0x518] sm:$0xff]
  %v629 = vld [vmem:[%s3 + $0x520] sm:$0xff]
  %v630 = vld [vmem:[%s3 + $0x528] sm:$0xff]
  %v631 = vld [vmem:[%s3 + $0x530] sm:$0xff]
  %v632 = vld [vmem:[%s3 + $0x538] sm:$0xff]
  %v633 = vld [vmem:[%s3 + $0x540] sm:$0xff]
  %v634 = vld [vmem:[%s3 + $0x548] sm:$0xff]
  %v635 = vld [vmem:[%s3 + $0x550] sm:$0xff]
  %v636 = vld [vmem:[%s3 + $0x558] sm:$0xff]
  %v637 = vld [vmem:[%s3 + $0x560] sm:$0xff]
  %v638 = vld [vmem:[%s3 + $0x568] sm:$0xff]
  %v639 = vld [vmem:[%s3 + $0x570] sm:$0xff]
  %v640 = vld [vmem:[%s3 + $0x578] sm:$0xff]
  %v641 = vld [vmem:[%s3 + $0x580] sm:$0xff]
  %v642 = vld [vmem:[%s3 + $0x588] sm:$0xff]
  %v643 = vld [vmem:[%s3 + $0x590] sm:$0xff]
  %v644 = vld [vmem:[%s3 + $0x598] sm:$0xff]
  %v645 = vld [vmem:[%s3 + $0x5a0] sm:$0xff]
  %v646 = vld [vmem:[%s3 + $0x5a8] sm:$0xff]
  %v647 = vld [vmem:[%s3 + $0x5b0] sm:$0xff]
  %v648 = vld [vmem:[%s3 + $0x5b8] sm:$0xff]
  %v649 = vld [vmem:[%s3 + $0x5c0] sm:$0xff]
  %v650 = vld [vmem:[%s3 + $0x5c8] sm:$0xff]
  %v651 = vld [vmem:[%s3 + $0x5d0] sm:$0xff]
  %v652 = vld [vmem:[%s3 + $0x5d8] sm:$0xff]
  %v653 = vld [vmem:[%s3 + $0x5e0] sm:$0xff]
  %v654 = vld [vmem:[%s3 + $0x5e8] sm:$0xff]
  %v655 = vld [vmem:[%s3 + $0x5f0] sm:$0xff]
  %v656 = vld [vmem:[%s3 + $0x5f8] sm:$0xff]
  %v657 = vld [vmem:[%s3 + $0x600] sm:$0xff]
  %v658 = vld [vmem:[%s3 + $0x608] sm:$0xff]
  %v659 = vld [vmem:[%s3 + $0x610] sm:$0xff]
  %v660 = vld [vmem:[%s3 + $0x618] sm:$0xff]
  %v661 = vld [vmem:[%s3 + $0x620] sm:$0xff]
  %v662 = vld [vmem:[%s3 + $0x628] sm:$0xff]
  %v663 = vld [vmem:[%s3 + $0x630] sm:$0xff]
  %v664 = vld [vmem:[%s3 + $0x638] sm:$0xff]
  %v665 = vld [vmem:[%s3 + $0x640] sm:$0xff]
  %v666 = vld [vmem:[%s3 + $0x648] sm:$0xff]
  %v667 = vld [vmem:[%s3 + $0x650] sm:$0xff]
  %v668 = vld [vmem:[%s3 + $0x658] sm:$0xff]
  %v669 = vld [vmem:[%s3 + $0x660] sm:$0xff]
  %v670 = vld [vmem:[%s3 + $0x668] sm:$0xff]
  %v671 = vld [vmem:[%s3 + $0x670] sm:$0xff]
  %v672 = vld [vmem:[%s3 + $0x678] sm:$0xff]
  %v673 = vld [vmem:[%s3 + $0x680] sm:$0xff]
  %v674 = vld [vmem:[%s3 + $0x688] sm:$0xff]
  %v675 = vld [vmem:[%s3 + $0x690] sm:$0xff]
  %v676 = vld [vmem:[%s3 + $0x698] sm:$0xff]
  %v677 = vld [vmem:[%s3 + $0x6a0] sm:$0xff]
  %v678 = vld [vmem:[%s3 + $0x6a8] sm:$0xff]
  %v679 = vld [vmem:[%s3 + $0x6b0] sm:$0xff]
  %v680 = vld [vmem:[%s3 + $0x6b8] sm:$0xff]
  %v681 = vld [vmem:[%s3 + $0x6c0] sm:$0xff]
  %v682 = vld [vmem:[%s3 + $0x6c8] sm:$0xff]
  %v683 = vld [vmem:[%s3 + $0x6d0] sm:$0xff]
  %v684 = vld [vmem:[%s3 + $0x6d8] sm:$0xff]
  %v685 = vld [vmem:[%s3 + $0x6e0] sm:$0xff]
  %v686 = vld [vmem:[%s3 + $0x6e8] sm:$0xff]
  %v687 = vld [vmem:[%s3 + $0x6f0] sm:$0xff]
  %v688 = vld [vmem:[%s3 + $0x6f8] sm:$0xff]
  %v689 = vld [vmem:[%s3 + $0x700] sm:$0xff]
  %v690 = vld [vmem:[%s3 + $0x708] sm:$0xff]
  %v691 = vld [vmem:[%s3 + $0x710] sm:$0xff]
  %v692 = vld [vmem:[%s3 + $0x718] sm:$0xff]
  %v693 = vld [vmem:[%s3 + $0x720] sm:$0xff]
  %v694 = vld [vmem:[%s3 + $0x728] sm:$0xff]
  %v695 = vld [vmem:[%s3 + $0x730] sm:$0xff]
  %v696 = vld [vmem:[%s3 + $0x738] sm:$0xff]
  %v697 = vld [vmem:[%s3 + $0x740] sm:$0xff]
  %v698 = vld [vmem:[%s3 + $0x748] sm:$0xff]
  %v699 = vld [vmem:[%s3 + $0x750] sm:$0xff]
  %v700 = vld [vmem:[%s3 + $0x758] sm:$0xff]
  %v701 = vld [vmem:[%s3 + $0x760] sm:$0xff]
  %v702 = vld [vmem:[%s3 + $0x768] sm:$0xff]
  %v703 = vld [vmem:[%s3 + $0x770] sm:$0xff]
  %v704 = vld [vmem:[%s3 + $0x778] sm:$0xff]
  %v705 = vld [vmem:[%s3 + $0x780] sm:$0xff]
  %v706 = vld [vmem:[%s3 + $0x788] sm:$0xff]
  %v707 = vld [vmem:[%s3 + $0x790] sm:$0xff]
  %v708 = vld [vmem:[%s3 + $0x798] sm:$0xff]
  %v709 = vld [vmem:[%s3 + $0x7a0] sm:$0xff]
  %v710 = vld [vmem:[%s3 + $0x7a8] sm:$0xff]
  %v711 = vld [vmem:[%s3 + $0x7b0] sm:$0xff]
  %v712 = vld [vmem:[%s3 + $0x7b8] sm:$0xff]
  %v713 = vld [vmem:[%s3 + $0x7c0] sm:$0xff]
  %v714 = vld [vmem:[%s3 + $0x7c8] sm:$0xff]
  %v715 = vld [vmem:[%s3 + $0x7d0] sm:$0xff]
  %v716 = vld [vmem:[%s3 + $0x7d8] sm:$0xff]
  %v717 = vld [vmem:[%s3 + $0x7e0] sm:$0xff]
  %v718 = vld [vmem:[%s3 + $0x7e8] sm:$0xff]
  %v719 = vld [vmem:[%s3 + $0x7f0] sm:$0xff]
  %v720 = vld [vmem:[%s3 + $0x7f8] sm:$0xff]
  %v721 = vld [vmem:[%s3 + $0x800] sm:$0xff]
  %v722 = vld [vmem:[%s3 + $0x808] sm:$0xff]
  %v723 = vld [vmem:[%s3 + $0x810] sm:$0xff]
  %v724 = vld [vmem:[%s3 + $0x818] sm:$0xff]
  %v725 = vld [vmem:[%s3 + $0x820] sm:$0xff]
  %v726 = vld [vmem:[%s3 + $0x828] sm:$0xff]
  %v727 = vld [vmem:[%s3 + $0x830] sm:$0xff]
  %v728 = vld [vmem:[%s3 + $0x838] sm:$0xff]
  %v729 = vld [vmem:[%s3 + $0x840] sm:$0xff]
  %v730 = vld [vmem:[%s3 + $0x848] sm:$0xff]
  %v731 = vld [vmem:[%s3 + $0x850] sm:$0xff]
  %v732 = vld [vmem:[%s3 + $0x858] sm:$0xff]
  %v733 = vld [vmem:[%s3 + $0x860] sm:$0xff]
  %v734 = vld [vmem:[%s3 + $0x868] sm:$0xff]
  %v735 = vld [vmem:[%s3 + $0x870] sm:$0xff]
  %v736 = vld [vmem:[%s3 + $0x878] sm:$0xff]
  %v737 = vld [vmem:[%s3 + $0x880] sm:$0xff]
  %v738 = vld [vmem:[%s3 + $0x888] sm:$0xff]
  %v739 = vld [vmem:[%s3 + $0x890] sm:$0xff]
  %v740 = vld [vmem:[%s3 + $0x898] sm:$0xff]
  %v741 = vld [vmem:[%s3 + $0x8a0] sm:$0xff]
  %v742 = vld [vmem:[%s3 + $0x8a8] sm:$0xff]
  %v743 = vld [vmem:[%s3 + $0x8b0] sm:$0xff]
  %v744 = vld [vmem:[%s3 + $0x8b8] sm:$0xff]
  %v745 = vld [vmem:[%s3 + $0x8c0] sm:$0xff]
  %v746 = vld [vmem:[%s3 + $0x8c8] sm:$0xff]
  %v747 = vld [vmem:[%s3 + $0x8d0] sm:$0xff]
  %v748 = vld [vmem:[%s3 + $0x8d8] sm:$0xff]
  %v749 = vld [vmem:[%s3 + $0x8e0] sm:$0xff]
  %v750 = vld [vmem:[%s3 + $0x8e8] sm:$0xff]
  %v751 = vld [vmem:[%s3 + $0x8f0] sm:$0xff]
  %v752 = vld [vmem:[%s3 + $0x8f8] sm:$0xff]
  %v753 = vld [vmem:[%s3 + $0x900] sm:$0xff]
  %v754 = vld [vmem:[%s3 + $0x908] sm:$0xff]
  %v755 = vld [vmem:[%s3 + $0x910] sm:$0xff]
  %v756 = vld [vmem:[%s3 + $0x918] sm:$0xff]
  %v757 = vld [vmem:[%s3 + $0x920] sm:$0xff]
  %v758 = vld [vmem:[%s3 + $0x928] sm:$0xff]
  %v759 = vld [vmem:[%s3 + $0x930] sm:$0xff]
  %v760 = vld [vmem:[%s3 + $0x938] sm:$0xff]
  %v761 = vld [vmem:[%s3 + $0x940] sm:$0xff]
  %v762 = vld [vmem:[%s3 + $0x948] sm:$0xff]
  %v763 = vld [vmem:[%s3 + $0x950] sm:$0xff]
  %v764 = vld [vmem:[%s3 + $0x958] sm:$0xff]
  %v765 = vld [vmem:[%s3 + $0x960] sm:$0xff]
  %v766 = vld [vmem:[%s3 + $0x968] sm:$0xff]
  %v767 = vld [vmem:[%s3 + $0x970] sm:$0xff]
  %v768 = vld [vmem:[%s3 + $0x978] sm:$0xff]
  %v769 = vld [vmem:[%s3 + $0x980] sm:$0xff]
  %v770 = vld [vmem:[%s3 + $0x988] sm:$0xff]
  %v771 = vld [vmem:[%s3 + $0x990] sm:$0xff]
  %v772 = vld [vmem:[%s3 + $0x998] sm:$0xff]
  %v773 = vld [vmem:[%s3 + $0x9a0] sm:$0xff]
  %v774 = vld [vmem:[%s3 + $0x9a8] sm:$0xff]
  %v775 = vld [vmem:[%s3 + $0x9b0] sm:$0xff]
  %v776 = vld [vmem:[%s3 + $0x9b8] sm:$0xff]
  %v777 = vld [vmem:[%s3 + $0x9c0] sm:$0xff]
  %v778 = vld [vmem:[%s3 + $0x9c8] sm:$0xff]
  %v779 = vld [vmem:[%s3 + $0x9d0] sm:$0xff]
  %v780 = vld [vmem:[%s3 + $0x9d8] sm:$0xff]
  %v781 = vld [vmem:[%s3 + $0x9e0] sm:$0xff]
  %v782 = vld [vmem:[%s3 + $0x9e8] sm:$0xff]
  %v783 = vld [vmem:[%s3 + $0x9f0] sm:$0xff]
  %v784 = vld [vmem:[%s3 + $0x9f8] sm:$0xff]
  %v785 = vld [vmem:[%s3 + $0xa00] sm:$0xff]
  %v786 = vld [vmem:[%s3 + $0xa08] sm:$0xff]
  %v787 = vld [vmem:[%s3 + $0xa10] sm:$0xff]
  %v788 = vld [vmem:[%s3 + $0xa18] sm:$0xff]
  %v789 = vld [vmem:[%s3 + $0xa20] sm:$0xff]
  %v790 = vld [vmem:[%s3 + $0xa28] sm:$0xff]
  %v791 = vld [vmem:[%s3 + $0xa30] sm:$0xff]
  %v792 = vld [vmem:[%s3 + $0xa38] sm:$0xff]
  %v793 = vld [vmem:[%s3 + $0xa40] sm:$0xff]
  %v794 = vld [vmem:[%s3 + $0xa48] sm:$0xff]
  %v795 = vld [vmem:[%s3 + $0xa50] sm:$0xff]
  %v796 = vld [vmem:[%s3 + $0xa58] sm:$0xff]
  %v797 = vld [vmem:[%s3 + $0xa60] sm:$0xff]
  %v798 = vld [vmem:[%s3 + $0xa68] sm:$0xff]
  %v799 = vld [vmem:[%s3 + $0xa70] sm:$0xff]
  %v800 = vld [vmem:[%s3 + $0xa78] sm:$0xff]
  %v801 = vld [vmem:[%s3 + $0xa80] sm:$0xff]
  %v802 = vld [vmem:[%s3 + $0xa88] sm:$0xff]
  %v803 = vld [vmem:[%s3 + $0xa90] sm:$0xff]
  %v804 = vld [vmem:[%s3 + $0xa98] sm:$0xff]
  %v805 = vld [vmem:[%s3 + $0xaa0] sm:$0xff]
  %v806 = vld [vmem:[%s3 + $0xaa8] sm:$0xff]
  %v807 = vld [vmem:[%s3 + $0xab0] sm:$0xff]
  %v808 = vld [vmem:[%s3 + $0xab8] sm:$0xff]
  %v809 = vld [vmem:[%s3 + $0xac0] sm:$0xff]
  %v810 = vld [vmem:[%s3 + $0xac8] sm:$0xff]
  %v811 = vld [vmem:[%s3 + $0xad0] sm:$0xff]
  %v812 = vld [vmem:[%s3 + $0xad8] sm:$0xff]
  %v813 = vld [vmem:[%s3 + $0xae0] sm:$0xff]
  %v814 = vld [vmem:[%s3 + $0xae8] sm:$0xff]
  %v815 = vld [vmem:[%s3 + $0xaf0] sm:$0xff]
  %v816 = vld [vmem:[%s3 + $0xaf8] sm:$0xff]
  %v817 = vld [vmem:[%s3 + $0xb00] sm:$0xff]
  %v818 = vld [vmem:[%s3 + $0xb08] sm:$0xff]
  %v819 = vld [vmem:[%s3 + $0xb10] sm:$0xff]
  %v820 = vld [vmem:[%s3 + $0xb18] sm:$0xff]
  %v821 = vld [vmem:[%s3 + $0xb20] sm:$0xff]
  %v822 = vld [vmem:[%s3 + $0xb28] sm:$0xff]
  %v823 = vld [vmem:[%s3 + $0xb30] sm:$0xff]
  %v824 = vld [vmem:[%s3 + $0xb38] sm:$0xff]
  %v825 = vld [vmem:[%s3 + $0xb40] sm:$0xff]
  %v826 = vld [vmem:[%s3 + $0xb48] sm:$0xff]
  %v827 = vld [vmem:[%s3 + $0xb50] sm:$0xff]
  %v828 = vld [vmem:[%s3 + $0xb58] sm:$0xff]
  %v829 = vld [vmem:[%s3 + $0xb60] sm:$0xff]
  %v830 = vld [vmem:[%s3 + $0xb68] sm:$0xff]
  %v831 = vld [vmem:[%s3 + $0xb70] sm:$0xff]
  %v832 = vld [vmem:[%s3 + $0xb78] sm:$0xff]
  %v833 = vld [vmem:[%s3 + $0xb80] sm:$0xff]
  %v834 = vld [vmem:[%s3 + $0xb88] sm:$0xff]
  %v835 = vld [vmem:[%s3 + $0xb90] sm:$0xff]
  %v836 = vld [vmem:[%s3 + $0xb98] sm:$0xff]
  %v837 = vld [vmem:[%s3 + $0xba0] sm:$0xff]
  %v838 = vld [vmem:[%s3 + $0xba8] sm:$0xff]
  %v839 = vld [vmem:[%s3 + $0xbb0] sm:$0xff]
  %v840 = vld [vmem:[%s3 + $0xbb8] sm:$0xff]
  %v841 = vld [vmem:[%s3 + $0xbc0] sm:$0xff]
  %v842 = vld [vmem:[%s3 + $0xbc8] sm:$0xff]
  %v843 = vld [vmem:[%s3 + $0xbd0] sm:$0xff]
  %v844 = vld [vmem:[%s3 + $0xbd8] sm:$0xff]
  %v845 = vld [vmem:[%s3 + $0xbe0] sm:$0xff]
  %v846 = vld [vmem:[%s3 + $0xbe8] sm:$0xff]
  %v847 = vld [vmem:[%s3 + $0xbf0] sm:$0xff]
  %v848 = vld [vmem:[%s3 + $0xbf8] sm:$0xff]
  %v849 = vld [vmem:[%s4] sm:$0xf]
  %v851 = vlaneseq
  %v852 = vshrl.u32 %v851, 7
  %v853 = vsub.s32 0, %v852
  %v854 = vrot.slane %v849, %v853
  %v855 = vlaneseq
  %v856 = vshrl.u32 %v855, 7
  %v857 = vsub.s32 1, %v856
  %v858 = vrot.slane %v849, %v857
  %v859 = vlaneseq
  %v860 = vshrl.u32 %v859, 7
  %v861 = vsub.s32 2, %v860
  %v862 = vrot.slane %v849, %v861
  %v863 = vlaneseq
  %v864 = vshrl.u32 %v863, 7
  %v865 = vsub.s32 3, %v864
  %v866 = vrot.slane %v849, %v865
  %871 = vmatprep.subr.mxu0 %v466
  %872 = vmatpush1.msra.mxu0 %v465
  %873 = vmatprep.subr.mxu0 %v470
  %874 = vmatpush1.msra.mxu0 %v469
  %875 = vmatprep.subr.mxu0 %v474
  %876 = vmatpush1.msra.mxu0 %v473
  %877 = vmatprep.subr.mxu0 %v478
  %878 = vmatpush1.msra.mxu0 %v477
  %879 = vmatprep.subr.mxu0 %v482
  %880 = vmatpush1.msra.mxu0 %v481
  %881 = vmatprep.subr.mxu0 %v486
  %882 = vmatpush1.msra.mxu0 %v485
  %883 = vmatprep.subr.mxu0 %v490
  %884 = vmatpush1.msra.mxu0 %v489
  %885 = vmatprep.subr.mxu0 %v494
  %886 = vmatpush1.msra.mxu0 %v493
  %887 = vmatprep.subr.mxu0 %v498
  %888 = vmatpush1.msra.mxu0 %v497
  %889 = vmatprep.subr.mxu0 %v502
  %890 = vmatpush1.msra.mxu0 %v501
  %891 = vmatprep.subr.mxu0 %v506
  %892 = vmatpush1.msra.mxu0 %v505
  %893 = vmatprep.subr.mxu0 %v510
  %894 = vmatpush1.msra.mxu0 %v509
  %895 = vmatprep.subr.mxu0 %v514
  %896 = vmatpush1.msra.mxu0 %v513
  %897 = vmatprep.subr.mxu0 %v518
  %898 = vmatpush1.msra.mxu0 %v517
  %899 = vmatprep.subr.mxu0 %v522
  %900 = vmatpush1.msra.mxu0 %v521
  %901 = vmatprep.subr.mxu0 %v526
  %902 = vmatpush1.msra.mxu0 %v525
  %903 = vmatprep.subr.mxu0 %v530
  %904 = vmatpush1.msra.mxu0 %v529
  %905 = vmatprep.subr.mxu0 %v534
  %906 = vmatpush1.msra.mxu0 %v533
  %907 = vmatprep.subr.mxu0 %v538
  %908 = vmatpush1.msra.mxu0 %v537
  %909 = vmatprep.subr.mxu0 %v542
  %910 = vmatpush1.msra.mxu0 %v541
  %911 = vmatprep.subr.mxu0 %v546
  %912 = vmatpush1.msra.mxu0 %v545
  %913 = vmatprep.subr.mxu0 %v550
  %914 = vmatpush1.msra.mxu0 %v549
  %915 = vmatprep.subr.mxu0 %v554
  %916 = vmatpush1.msra.mxu0 %v553
  %917 = vmatprep.subr.mxu0 %v558
  %918 = vmatpush1.msra.mxu0 %v557
  %919 = vmatprep.subr.mxu0 %v562
  %920 = vmatpush1.msra.mxu0 %v561
  %921 = vmatprep.subr.mxu0 %v566
  %922 = vmatpush1.msra.mxu0 %v565
  %923 = vmatprep.subr.mxu0 %v570
  %924 = vmatpush1.msra.mxu0 %v569
  %925 = vmatprep.subr.mxu0 %v574
  %926 = vmatpush1.msra.mxu0 %v573
  %927 = vmatprep.subr.mxu0 %v578
  %928 = vmatpush1.msra.mxu0 %v577
  %929 = vmatprep.subr.mxu0 %v582
  %930 = vmatpush1.msra.mxu0 %v581
  %931 = vmatprep.subr.mxu0 %v586
  %932 = vmatpush1.msra.mxu0 %v585
  %933 = vmatprep.subr.mxu0 %v590
  %934 = vmatpush1.msra.mxu0 %v589
  %935 = vmatprep.mubr.f32.mxu0 %v321
  %936 = vmatmul.mubr.f32.gmra.mrb[0].mxu0 %v319
  %v937 = vpop.f32.mrb[0].mxu0
  %v938 = vadd.f32 %v854, %v937
  %v939 = vpop.f32.mrb[0].mxu0
  %v940 = vadd.f32 %v858, %v939
  %941 = vdwg.mxu0
  %942 = vmatprep.subr.mxu0 %v594
  %943 = vmatpush1.msra.mxu0 %v593
  %944 = vmatprep.subr.mxu0 %v598
  %945 = vmatpush1.msra.mxu0 %v597
  %946 = vmatprep.subr.mxu0 %v602
  %947 = vmatpush1.msra.mxu0 %v601
  %948 = vmatprep.subr.mxu0 %v606
  %949 = vmatpush1.msra.mxu0 %v605
  %950 = vmatprep.subr.mxu0 %v610
  %951 = vmatpush1.msra.mxu0 %v609
  %952 = vmatprep.subr.mxu0 %v614
  %953 = vmatpush1.msra.mxu0 %v613
  %954 = vmatprep.subr.mxu0 %v618
  %955 = vmatpush1.msra.mxu0 %v617
  %956 = vmatprep.subr.mxu0 %v622
  %957 = vmatpush1.msra.mxu0 %v621
  %958 = vmatprep.subr.mxu0 %v626
  %959 = vmatpush1.msra.mxu0 %v625
  %960 = vmatprep.subr.mxu0 %v630
  %961 = vmatpush1.msra.mxu0 %v629
  %962 = vmatprep.subr.mxu0 %v634
  %963 = vmatpush1.msra.mxu0 %v633
  %964 = vmatprep.subr.mxu0 %v638
  %965 = vmatpush1.msra.mxu0 %v637
  %966 = vmatprep.subr.mxu0 %v642
  %967 = vmatpush1.msra.mxu0 %v641
  %968 = vmatprep.subr.mxu0 %v646
  %969 = vmatpush1.msra.mxu0 %v645
  %970 = vmatprep.subr.mxu0 %v650
  %971 = vmatpush1.msra.mxu0 %v649
  %972 = vmatprep.subr.mxu0 %v654
  %973 = vmatpush1.msra.mxu0 %v653
  %974 = vmatprep.subr.mxu0 %v658
  %975 = vmatpush1.msra.mxu0 %v657
  %976 = vmatprep.subr.mxu0 %v662
  %977 = vmatpush1.msra.mxu0 %v661
  %978 = vmatprep.subr.mxu0 %v666
  %979 = vmatpush1.msra.mxu0 %v665
  %980 = vmatprep.subr.mxu0 %v670
  %981 = vmatpush1.msra.mxu0 %v669
  %982 = vmatprep.subr.mxu0 %v674
  %983 = vmatpush1.msra.mxu0 %v673
  %984 = vmatprep.subr.mxu0 %v678
  %985 = vmatpush1.msra.mxu0 %v677
  %986 = vmatprep.subr.mxu0 %v682
  %987 = vmatpush1.msra.mxu0 %v681
  %988 = vmatprep.subr.mxu0 %v686
  %989 = vmatpush1.msra.mxu0 %v685
  %990 = vmatprep.subr.mxu0 %v690
  %991 = vmatpush1.msra.mxu0 %v689
  %992 = vmatprep.subr.mxu0 %v694
  %993 = vmatpush1.msra.mxu0 %v693
  %994 = vmatprep.subr.mxu0 %v698
  %995 = vmatpush1.msra.mxu0 %v697
  %996 = vmatprep.subr.mxu0 %v702
  %997 = vmatpush1.msra.mxu0 %v701
  %998 = vmatprep.subr.mxu0 %v706
  %999 = vmatpush1.msra.mxu0 %v705
  %1000 = vmatprep.subr.mxu0 %v710
  %1001 = vmatpush1.msra.mxu0 %v709
  %1002 = vmatprep.subr.mxu0 %v714
  %1003 = vmatpush1.msra.mxu0 %v713
  %1004 = vmatprep.subr.mxu0 %v718
  %1005 = vmatpush1.msra.mxu0 %v717
  %1006 = vmatprep.mubr.f32.mxu0 %v392
  %1007 = vmatmul.mubr.f32.gmra.mrb[0].mxu0 %v390
  %v1008 = vpop.f32.mrb[0].mxu0
  %v1009 = vadd.f32 %v938, %v1008
  %v1010 = vpop.f32.mrb[0].mxu0
  %v1011 = vadd.f32 %v940, %v1010
  %1012 = vdwg.mxu0
  %1013 = vmatprep.subr.mxu0 %v722
  %1014 = vmatpush1.msra.mxu0 %v721
  %1015 = vmatprep.subr.mxu0 %v726
  %1016 = vmatpush1.msra.mxu0 %v725
  %1017 = vmatprep.subr.mxu0 %v730
  %1018 = vmatpush1.msra.mxu0 %v729
  %1019 = vmatprep.subr.mxu0 %v734
  %1020 = vmatpush1.msra.mxu0 %v733
  %1021 = vmatprep.subr.mxu0 %v738
  %1022 = vmatpush1.msra.mxu0 %v737
  %1023 = vmatprep.subr.mxu0 %v742
  %1024 = vmatpush1.msra.mxu0 %v741
  %1025 = vmatprep.subr.mxu0 %v746
  %1026 = vmatpush1.msra.mxu0 %v745
  %1027 = vmatprep.subr.mxu0 %v750
  %1028 = vmatpush1.msra.mxu0 %v749
  %1029 = vmatprep.subr.mxu0 %v754
  %1030 = vmatpush1.msra.mxu0 %v753
  %1031 = vmatprep.subr.mxu0 %v758
  %1032 = vmatpush1.msra.mxu0 %v757
  %1033 = vmatprep.subr.mxu0 %v762
  %1034 = vmatpush1.msra.mxu0 %v761
  %1035 = vmatprep.subr.mxu0 %v766
  %1036 = vmatpush1.msra.mxu0 %v765
  %1037 = vmatprep.subr.mxu0 %v770
  %1038 = vmatpush1.msra.mxu0 %v769
  %1039 = vmatprep.subr.mxu0 %v774
  %1040 = vmatpush1.msra.mxu0 %v773
  %1041 = vmatprep.subr.mxu0 %v778
  %1042 = vmatpush1.msra.mxu0 %v777
  %1043 = vmatprep.subr.mxu0 %v782
  %1044 = vmatpush1.msra.mxu0 %v781
  %1045 = vmatprep.subr.mxu0 %v786
  %1046 = vmatpush1.msra.mxu0 %v785
  %1047 = vmatprep.subr.mxu0 %v790
  %1048 = vmatpush1.msra.mxu0 %v789
  %1049 = vmatprep.subr.mxu0 %v794
  %1050 = vmatpush1.msra.mxu0 %v793
  %1051 = vmatprep.subr.mxu0 %v798
  %1052 = vmatpush1.msra.mxu0 %v797
  %1053 = vmatprep.subr.mxu0 %v802
  %1054 = vmatpush1.msra.mxu0 %v801
  %1055 = vmatprep.subr.mxu0 %v806
  %1056 = vmatpush1.msra.mxu0 %v805
  %1057 = vmatprep.subr.mxu0 %v810
  %1058 = vmatpush1.msra.mxu0 %v809
  %1059 = vmatprep.subr.mxu0 %v814
  %1060 = vmatpush1.msra.mxu0 %v813
  %1061 = vmatprep.subr.mxu0 %v818
  %1062 = vmatpush1.msra.mxu0 %v817
  %1063 = vmatprep.subr.mxu0 %v822
  %1064 = vmatpush1.msra.mxu0 %v821
  %1065 = vmatprep.subr.mxu0 %v826
  %1066 = vmatpush1.msra.mxu0 %v825
  %1067 = vmatprep.subr.mxu0 %v830
  %1068 = vmatpush1.msra.mxu0 %v829
  %1069 = vmatprep.subr.mxu0 %v834
  %1070 = vmatpush1.msra.mxu0 %v833
  %1071 = vmatprep.subr.mxu0 %v838
  %1072 = vmatpush1.msra.mxu0 %v837
  %1073 = vmatprep.subr.mxu0 %v842
  %1074 = vmatpush1.msra.mxu0 %v841
  %1075 = vmatprep.subr.mxu0 %v846
  %1076 = vmatpush1.msra.mxu0 %v845
  %1077 = vmatprep.mubr.f32.mxu0 %v463
  %1078 = vmatmul.mubr.f32.gmra.mrb[0].mxu0 %v461
  %v1079 = vpop.f32.mrb[0].mxu0
  %v1080 = vadd.f32 %v1009, %v1079
  %v1081 = vpop.f32.mrb[0].mxu0
  %v1082 = vadd.f32 %v1011, %v1081
  %1083 = vdwg.mxu0
  %1084 = vmatprep.subr.mxu0 %v468
  %1085 = vmatpush1.msra.mxu0 %v467
  %1086 = vmatprep.subr.mxu0 %v472
  %1087 = vmatpush1.msra.mxu0 %v471
  %1088 = vmatprep.subr.mxu0 %v476
  %1089 = vmatpush1.msra.mxu0 %v475
  %1090 = vmatprep.subr.mxu0 %v480
  %1091 = vmatpush1.msra.mxu0 %v479
  %1092 = vmatprep.subr.mxu0 %v484
  %1093 = vmatpush1.msra.mxu0 %v483
  %1094 = vmatprep.subr.mxu0 %v488
  %1095 = vmatpush1.msra.mxu0 %v487
  %1096 = vmatprep.subr.mxu0 %v492
  %1097 = vmatpush1.msra.mxu0 %v491
  %1098 = vmatprep.subr.mxu0 %v496
  %1099 = vmatpush1.msra.mxu0 %v495
  %1100 = vmatprep.subr.mxu0 %v500
  %1101 = vmatpush1.msra.mxu0 %v499
  %1102 = vmatprep.subr.mxu0 %v504
  %1103 = vmatpush1.msra.mxu0 %v503
  %1104 = vmatprep.subr.mxu0 %v508
  %1105 = vmatpush1.msra.mxu0 %v507
  %1106 = vmatprep.subr.mxu0 %v512
  %1107 = vmatpush1.msra.mxu0 %v511
  %1108 = vmatprep.subr.mxu0 %v516
  %1109 = vmatpush1.msra.mxu0 %v515
  %1110 = vmatprep.subr.mxu0 %v520
  %1111 = vmatpush1.msra.mxu0 %v519
  %1112 = vmatprep.subr.mxu0 %v524
  %1113 = vmatpush1.msra.mxu0 %v523
  %1114 = vmatprep.subr.mxu0 %v528
  %1115 = vmatpush1.msra.mxu0 %v527
  %1116 = vmatprep.subr.mxu0 %v532
  %1117 = vmatpush1.msra.mxu0 %v531
  %1118 = vmatprep.subr.mxu0 %v536
  %1119 = vmatpush1.msra.mxu0 %v535
  %1120 = vmatprep.subr.mxu0 %v540
  %1121 = vmatpush1.msra.mxu0 %v539
  %1122 = vmatprep.subr.mxu0 %v544
  %1123 = vmatpush1.msra.mxu0 %v543
  %1124 = vmatprep.subr.mxu0 %v548
  %1125 = vmatpush1.msra.mxu0 %v547
  %1126 = vmatprep.subr.mxu0 %v552
  %1127 = vmatpush1.msra.mxu0 %v551
  %1128 = vmatprep.subr.mxu0 %v556
  %1129 = vmatpush1.msra.mxu0 %v555
  %1130 = vmatprep.subr.mxu0 %v560
  %1131 = vmatpush1.msra.mxu0 %v559
  %1132 = vmatprep.subr.mxu0 %v564
  %1133 = vmatpush1.msra.mxu0 %v563
  %1134 = vmatprep.subr.mxu0 %v568
  %1135 = vmatpush1.msra.mxu0 %v567
  %1136 = vmatprep.subr.mxu0 %v572
  %1137 = vmatpush1.msra.mxu0 %v571
  %1138 = vmatprep.subr.mxu0 %v576
  %1139 = vmatpush1.msra.mxu0 %v575
  %1140 = vmatprep.subr.mxu0 %v580
  %1141 = vmatpush1.msra.mxu0 %v579
  %1142 = vmatprep.subr.mxu0 %v584
  %1143 = vmatpush1.msra.mxu0 %v583
  %1144 = vmatprep.subr.mxu0 %v588
  %1145 = vmatpush1.msra.mxu0 %v587
  %1146 = vmatprep.subr.mxu0 %v592
  %1147 = vmatpush1.msra.mxu0 %v591
  %1148 = vmatprep.mubr.f32.mxu0 %v321
  %1149 = vmatmul.mubr.f32.gmra.mrb[0].mxu0 %v319
  %v1150 = vpop.f32.mrb[0].mxu0
  %v1151 = vadd.f32 %v862, %v1150
  %v1152 = vpop.f32.mrb[0].mxu0
  %v1153 = vadd.f32 %v866, %v1152
  %1154 = vdwg.mxu0
  %1155 = vmatprep.subr.mxu0 %v596
  %1156 = vmatpush1.msra.mxu0 %v595
  %1157 = vmatprep.subr.mxu0 %v600
  %1158 = vmatpush1.msra.mxu0 %v599
  %1159 = vmatprep.subr.mxu0 %v604
  %1160 = vmatpush1.msra.mxu0 %v603
  %1161 = vmatprep.subr.mxu0 %v608
  %1162 = vmatpush1.msra.mxu0 %v607
  %1163 = vmatprep.subr.mxu0 %v612
  %1164 = vmatpush1.msra.mxu0 %v611
  %1165 = vmatprep.subr.mxu0 %v616
  %1166 = vmatpush1.msra.mxu0 %v615
  %1167 = vmatprep.subr.mxu0 %v620
  %1168 = vmatpush1.msra.mxu0 %v619
  %1169 = vmatprep.subr.mxu0 %v624
  %1170 = vmatpush1.msra.mxu0 %v623
  %1171 = vmatprep.subr.mxu0 %v628
  %1172 = vmatpush1.msra.mxu0 %v627
  %1173 = vmatprep.subr.mxu0 %v632
  %1174 = vmatpush1.msra.mxu0 %v631
  %1175 = vmatprep.subr.mxu0 %v636
  %1176 = vmatpush1.msra.mxu0 %v635
  %1177 = vmatprep.subr.mxu0 %v640
  %1178 = vmatpush1.msra.mxu0 %v639
  %1179 = vmatprep.subr.mxu0 %v644
  %1180 = vmatpush1.msra.mxu0 %v643
  %1181 = vmatprep.subr.mxu0 %v648
  %1182 = vmatpush1.msra.mxu0 %v647
  %1183 = vmatprep.subr.mxu0 %v652
  %1184 = vmatpush1.msra.mxu0 %v651
  %1185 = vmatprep.subr.mxu0 %v656
  %1186 = vmatpush1.msra.mxu0 %v655
  %1187 = vmatprep.subr.mxu0 %v660
  %1188 = vmatpush1.msra.mxu0 %v659
  %1189 = vmatprep.subr.mxu0 %v664
  %1190 = vmatpush1.msra.mxu0 %v663
  %1191 = vmatprep.subr.mxu0 %v668
  %1192 = vmatpush1.msra.mxu0 %v667
  %1193 = vmatprep.subr.mxu0 %v672
  %1194 = vmatpush1.msra.mxu0 %v671
  %1195 = vmatprep.subr.mxu0 %v676
  %1196 = vmatpush1.msra.mxu0 %v675
  %1197 = vmatprep.subr.mxu0 %v680
  %1198 = vmatpush1.msra.mxu0 %v679
  %1199 = vmatprep.subr.mxu0 %v684
  %1200 = vmatpush1.msra.mxu0 %v683
  %1201 = vmatprep.subr.mxu0 %v688
  %1202 = vmatpush1.msra.mxu0 %v687
  %1203 = vmatprep.subr.mxu0 %v692
  %1204 = vmatpush1.msra.mxu0 %v691
  %1205 = vmatprep.subr.mxu0 %v696
  %1206 = vmatpush1.msra.mxu0 %v695
  %1207 = vmatprep.subr.mxu0 %v700
  %1208 = vmatpush1.msra.mxu0 %v699
  %1209 = vmatprep.subr.mxu0 %v704
  %1210 = vmatpush1.msra.mxu0 %v703
  %1211 = vmatprep.subr.mxu0 %v708
  %1212 = vmatpush1.msra.mxu0 %v707
  %1213 = vmatprep.subr.mxu0 %v712
  %1214 = vmatpush1.msra.mxu0 %v711
  %1215 = vmatprep.subr.mxu0 %v716
  %1216 = vmatpush1.msra.mxu0 %v715
  %1217 = vmatprep.subr.mxu0 %v720
  %1218 = vmatpush1.msra.mxu0 %v719
  %1219 = vmatprep.mubr.f32.mxu0 %v392
  %1220 = vmatmul.mubr.f32.gmra.mrb[0].mxu0 %v390
  %v1221 = vpop.f32.mrb[0].mxu0
  %v1222 = vadd.f32 %v1151, %v1221
  %v1223 = vpop.f32.mrb[0].mxu0
  %v1224 = vadd.f32 %v1153, %v1223
  %1225 = vdwg.mxu0
  %1226 = vmatprep.subr.mxu0 %v724
  %1227 = vmatpush1.msra.mxu0 %v723
  %1228 = vmatprep.subr.mxu0 %v728
  %1229 = vmatpush1.msra.mxu0 %v727
  %1230 = vmatprep.subr.mxu0 %v732
  %1231 = vmatpush1.msra.mxu0 %v731
  %1232 = vmatprep.subr.mxu0 %v736
  %1233 = vmatpush1.msra.mxu0 %v735
  %1234 = vmatprep.subr.mxu0 %v740
  %1235 = vmatpush1.msra.mxu0 %v739
  %1236 = vmatprep.subr.mxu0 %v744
  %1237 = vmatpush1.msra.mxu0 %v743
  %1238 = vmatprep.subr.mxu0 %v748
  %1239 = vmatpush1.msra.mxu0 %v747
  %1240 = vmatprep.subr.mxu0 %v752
  %1241 = vmatpush1.msra.mxu0 %v751
  %1242 = vmatprep.subr.mxu0 %v756
  %1243 = vmatpush1.msra.mxu0 %v755
  %1244 = vmatprep.subr.mxu0 %v760
  %1245 = vmatpush1.msra.mxu0 %v759
  %1246 = vmatprep.subr.mxu0 %v764
  %1247 = vmatpush1.msra.mxu0 %v763
  %1248 = vmatprep.subr.mxu0 %v768
  %1249 = vmatpush1.msra.mxu0 %v767
  %1250 = vmatprep.subr.mxu0 %v772
  %1251 = vmatpush1.msra.mxu0 %v771
  %1252 = vmatprep.subr.mxu0 %v776
  %1253 = vmatpush1.msra.mxu0 %v775
  %1254 = vmatprep.subr.mxu0 %v780
  %1255 = vmatpush1.msra.mxu0 %v779
  %1256 = vmatprep.subr.mxu0 %v784
  %1257 = vmatpush1.msra.mxu0 %v783
  %1258 = vmatprep.subr.mxu0 %v788
  %1259 = vmatpush1.msra.mxu0 %v787
  %1260 = vmatprep.subr.mxu0 %v792
  %1261 = vmatpush1.msra.mxu0 %v791
  %1262 = vmatprep.subr.mxu0 %v796
  %1263 = vmatpush1.msra.mxu0 %v795
  %1264 = vmatprep.subr.mxu0 %v800
  %1265 = vmatpush1.msra.mxu0 %v799
  %1266 = vmatprep.subr.mxu0 %v804
  %1267 = vmatpush1.msra.mxu0 %v803
  %1268 = vmatprep.subr.mxu0 %v808
  %1269 = vmatpush1.msra.mxu0 %v807
  %1270 = vmatprep.subr.mxu0 %v812
  %1271 = vmatpush1.msra.mxu0 %v811
  %1272 = vmatprep.subr.mxu0 %v816
  %1273 = vmatpush1.msra.mxu0 %v815
  %1274 = vmatprep.subr.mxu0 %v820
  %1275 = vmatpush1.msra.mxu0 %v819
  %1276 = vmatprep.subr.mxu0 %v824
  %1277 = vmatpush1.msra.mxu0 %v823
  %1278 = vmatprep.subr.mxu0 %v828
  %1279 = vmatpush1.msra.mxu0 %v827
  %1280 = vmatprep.subr.mxu0 %v832
  %1281 = vmatpush1.msra.mxu0 %v831
  %1282 = vmatprep.subr.mxu0 %v836
  %1283 = vmatpush1.msra.mxu0 %v835
  %1284 = vmatprep.subr.mxu0 %v840
  %1285 = vmatpush1.msra.mxu0 %v839
  %1286 = vmatprep.subr.mxu0 %v844
  %1287 = vmatpush1.msra.mxu0 %v843
  %1288 = vmatprep.subr.mxu0 %v848
  %1289 = vmatpush1.msra.mxu0 %v847
  %1290 = vmatprep.mubr.f32.mxu0 %v463
  %1291 = vmatmul.mubr.f32.gmra.mrb[0].mxu0 %v461
  %v1292 = vpop.f32.mrb[0].mxu0
  %v1293 = vadd.f32 %v1222, %v1292
  %v1294 = vpop.f32.mrb[0].mxu0
  %v1295 = vadd.f32 %v1224, %v1294
  %1296 = vdwg.mxu0
  %v1297 = vmax.f32 %v1080, 0.0
  %v1298 = vmax.f32 %v1082, 0.0
  %v1299 = vmax.f32 %v1293, 0.0
  %v1300 = vmax.f32 %v1295, 0.0
  %v1301 = vld [vmem:[%s5] sm:$0xff]
  %v1302 = vld [vmem:[%s5 + $0x8] sm:$0xff]
  %v1303 = vld [vmem:[%s5 + $0x10] sm:$0xff]
  %v1304 = vld [vmem:[%s5 + $0x18] sm:$0xff]
  %v1305 = vld [vmem:[%s5 + $0x20] sm:$0xff]
  %v1306 = vld [vmem:[%s5 + $0x28] sm:$0xff]
  %v1307 = vld [vmem:[%s5 + $0x30] sm:$0xff]
  %v1308 = vld [vmem:[%s5 + $0x38] sm:$0xff]
  %v1309 = vld [vmem:[%s5 + $0x40] sm:$0xff]
  %v1310 = vld [vmem:[%s5 + $0x48] sm:$0xff]
  %v1311 = vld [vmem:[%s5 + $0x50] sm:$0xff]
  %v1312 = vld [vmem:[%s5 + $0x58] sm:$0xff]
  %v1313 = vld [vmem:[%s5 + $0x60] sm:$0xff]
  %v1314 = vld [vmem:[%s5 + $0x68] sm:$0xff]
  %v1315 = vld [vmem:[%s5 + $0x70] sm:$0xff]
  %v1316 = vld [vmem:[%s5 + $0x78] sm:$0xff]
  %v1317 = vld [vmem:[%s5 + $0x80] sm:$0xff]
  %v1318 = vld [vmem:[%s5 + $0x88] sm:$0xff]
  %v1319 = vld [vmem:[%s5 + $0x90] sm:$0xff]
  %v1320 = vld [vmem:[%s5 + $0x98] sm:$0xff]
  %v1321 = vld [vmem:[%s5 + $0xa0] sm:$0xff]
  %v1322 = vld [vmem:[%s5 + $0xa8] sm:$0xff]
  %v1323 = vld [vmem:[%s5 + $0xb0] sm:$0xff]
  %v1324 = vld [vmem:[%s5 + $0xb8] sm:$0xff]
  %v1325 = vld [vmem:[%s5 + $0xc0] sm:$0xff]
  %v1326 = vld [vmem:[%s5 + $0xc8] sm:$0xff]
  %v1327 = vld [vmem:[%s5 + $0xd0] sm:$0xff]
  %v1328 = vld [vmem:[%s5 + $0xd8] sm:$0xff]
  %v1329 = vld [vmem:[%s5 + $0xe0] sm:$0xff]
  %v1330 = vld [vmem:[%s5 + $0xe8] sm:$0xff]
  %v1331 = vld [vmem:[%s5 + $0xf0] sm:$0xff]
  %v1332 = vld [vmem:[%s5 + $0xf8] sm:$0xff]
  %v1333 = vld [vmem:[%s5 + $0x100] sm:$0xff]
  %v1334 = vld [vmem:[%s5 + $0x108] sm:$0xff]
  %v1335 = vld [vmem:[%s5 + $0x110] sm:$0xff]
  %v1336 = vld [vmem:[%s5 + $0x118] sm:$0xff]
  %v1337 = vld [vmem:[%s5 + $0x120] sm:$0xff]
  %v1338 = vld [vmem:[%s5 + $0x128] sm:$0xff]
  %v1339 = vld [vmem:[%s5 + $0x130] sm:$0xff]
  %v1340 = vld [vmem:[%s5 + $0x138] sm:$0xff]
  %v1341 = vld [vmem:[%s5 + $0x140] sm:$0xff]
  %v1342 = vld [vmem:[%s5 + $0x148] sm:$0xff]
  %v1343 = vld [vmem:[%s5 + $0x150] sm:$0xff]
  %v1344 = vld [vmem:[%s5 + $0x158] sm:$0xff]
  %v1345 = vld [vmem:[%s5 + $0x160] sm:$0xff]
  %v1346 = vld [vmem:[%s5 + $0x168] sm:$0xff]
  %v1347 = vld [vmem:[%s5 + $0x170] sm:$0xff]
  %v1348 = vld [vmem:[%s5 + $0x178] sm:$0xff]
  %v1349 = vld [vmem:[%s5 + $0x180] sm:$0xff]
  %v1350 = vld [vmem:[%s5 + $0x188] sm:$0xff]
  %v1351 = vld [vmem:[%s5 + $0x190] sm:$0xff]
  %v1352 = vld [vmem:[%s5 + $0x198] sm:$0xff]
  %v1353 = vld [vmem:[%s5 + $0x1a0] sm:$0xff]
  %v1354 = vld [vmem:[%s5 + $0x1a8] sm:$0xff]
  %v1355 = vld [vmem:[%s5 + $0x1b0] sm:$0xff]
  %v1356 = vld [vmem:[%s5 + $0x1b8] sm:$0xff]
  %v1357 = vld [vmem:[%s5 + $0x1c0] sm:$0xff]
  %v1358 = vld [vmem:[%s5 + $0x1c8] sm:$0xff]
  %v1359 = vld [vmem:[%s5 + $0x1d0] sm:$0xff]
  %v1360 = vld [vmem:[%s5 + $0x1d8] sm:$0xff]
  %v1361 = vld [vmem:[%s5 + $0x1e0] sm:$0xff]
  %v1362 = vld [vmem:[%s5 + $0x1e8] sm:$0xff]
  %v1363 = vld [vmem:[%s5 + $0x1f0] sm:$0xff]
  %v1364 = vld [vmem:[%s5 + $0x1f8] sm:$0xff]
  %v1365 = vld [vmem:[%s6] sm:$0x1]
  %v1367 = vlaneseq
  %v1368 = vshrl.u32 %v1367, 7
  %v1369 = vsub.s32 0, %v1368
  %v1370 = vrot.slane %v1365, %v1369
  %1372 = vmatprep.subr.mxu0 0.0
  %1373 = vmatpush1.msra.mxu0 %v1301
  %1374 = vmatprep.subr.mxu0 0.0
  %1375 = vmatpush1.msra.mxu0 %v1302
  %1376 = vmatprep.subr.mxu0 0.0
  %1377 = vmatpush1.msra.mxu0 %v1303
  %1378 = vmatprep.subr.mxu0 0.0
  %1379 = vmatpush1.msra.mxu0 %v1304
  %1380 = vmatprep.subr.mxu0 0.0
  %1381 = vmatpush1.msra.mxu0 %v1305
  %1382 = vmatprep.subr.mxu0 0.0
  %1383 = vmatpush1.msra.mxu0 %v1306
  %1384 = vmatprep.subr.mxu0 0.0
  %1385 = vmatpush1.msra.mxu0 %v1307
  %1386 = vmatprep.subr.mxu0 0.0
  %1387 = vmatpush1.msra.mxu0 %v1308
  %1388 = vmatprep.subr.mxu0 0.0
  %1389 = vmatpush1.msra.mxu0 %v1309
  %1390 = vmatprep.subr.mxu0 0.0
  %1391 = vmatpush1.msra.mxu0 %v1310
  %1392 = vmatprep.subr.mxu0 0.0
  %1393 = vmatpush1.msra.mxu0 %v1311
  %1394 = vmatprep.subr.mxu0 0.0
  %1395 = vmatpush1.msra.mxu0 %v1312
  %1396 = vmatprep.subr.mxu0 0.0
  %1397 = vmatpush1.msra.mxu0 %v1313
  %1398 = vmatprep.subr.mxu0 0.0
  %1399 = vmatpush1.msra.mxu0 %v1314
  %1400 = vmatprep.subr.mxu0 0.0
  %1401 = vmatpush1.msra.mxu0 %v1315
  %1402 = vmatprep.subr.mxu0 0.0
  %1403 = vmatpush1.msra.mxu0 %v1316
  %1404 = vmatprep.subr.mxu0 0.0
  %1405 = vmatpush1.msra.mxu0 %v1317
  %1406 = vmatprep.subr.mxu0 0.0
  %1407 = vmatpush1.msra.mxu0 %v1318
  %1408 = vmatprep.subr.mxu0 0.0
  %1409 = vmatpush1.msra.mxu0 %v1319
  %1410 = vmatprep.subr.mxu0 0.0
  %1411 = vmatpush1.msra.mxu0 %v1320
  %1412 = vmatprep.subr.mxu0 0.0
  %1413 = vmatpush1.msra.mxu0 %v1321
  %1414 = vmatprep.subr.mxu0 0.0
  %1415 = vmatpush1.msra.mxu0 %v1322
  %1416 = vmatprep.subr.mxu0 0.0
  %1417 = vmatpush1.msra.mxu0 %v1323
  %1418 = vmatprep.subr.mxu0 0.0
  %1419 = vmatpush1.msra.mxu0 %v1324
  %1420 = vmatprep.subr.mxu0 0.0
  %1421 = vmatpush1.msra.mxu0 %v1325
  %1422 = vmatprep.subr.mxu0 0.0
  %1423 = vmatpush1.msra.mxu0 %v1326
  %1424 = vmatprep.subr.mxu0 0.0
  %1425 = vmatpush1.msra.mxu0 %v1327
  %1426 = vmatprep.subr.mxu0 0.0
  %1427 = vmatpush1.msra.mxu0 %v1328
  %1428 = vmatprep.subr.mxu0 0.0
  %1429 = vmatpush1.msra.mxu0 %v1329
  %1430 = vmatprep.subr.mxu0 0.0
  %1431 = vmatpush1.msra.mxu0 %v1330
  %1432 = vmatprep.subr.mxu0 0.0
  %1433 = vmatpush1.msra.mxu0 %v1331
  %1434 = vmatprep.subr.mxu0 0.0
  %1435 = vmatpush1.msra.mxu0 %v1332
  %1436 = vmatprep.mubr.f32.mxu0 %v1298
  %1437 = vmatmul.mubr.f32.gmra.mrb[0].mxu0 %v1297
  %v1438 = vpop.f32.mrb[0].mxu0
  %v1439 = vadd.f32 %v1370, %v1438
  %v1440 = vpop.f32.mrb[0].mxu0
  %1441 = vdwg.mxu0
  %1442 = vmatprep.subr.mxu0 0.0
  %1443 = vmatpush1.msra.mxu0 %v1333
  %1444 = vmatprep.subr.mxu0 0.0
  %1445 = vmatpush1.msra.mxu0 %v1334
  %1446 = vmatprep.subr.mxu0 0.0
  %1447 = vmatpush1.msra.mxu0 %v1335
  %1448 = vmatprep.subr.mxu0 0.0
  %1449 = vmatpush1.msra.mxu0 %v1336
  %1450 = vmatprep.subr.mxu0 0.0
  %1451 = vmatpush1.msra.mxu0 %v1337
  %1452 = vmatprep.subr.mxu0 0.0
  %1453 = vmatpush1.msra.mxu0 %v1338
  %1454 = vmatprep.subr.mxu0 0.0
  %1455 = vmatpush1.msra.mxu0 %v1339
  %1456 = vmatprep.subr.mxu0 0.0
  %1457 = vmatpush1.msra.mxu0 %v1340
  %1458 = vmatprep.subr.mxu0 0.0
  %1459 = vmatpush1.msra.mxu0 %v1341
  %1460 = vmatprep.subr.mxu0 0.0
  %1461 = vmatpush1.msra.mxu0 %v1342
  %1462 = vmatprep.subr.mxu0 0.0
  %1463 = vmatpush1.msra.mxu0 %v1343
  %1464 = vmatprep.subr.mxu0 0.0
  %1465 = vmatpush1.msra.mxu0 %v1344
  %1466 = vmatprep.subr.mxu0 0.0
  %1467 = vmatpush1.msra.mxu0 %v1345
  %1468 = vmatprep.subr.mxu0 0.0
  %1469 = vmatpush1.msra.mxu0 %v1346
  %1470 = vmatprep.subr.mxu0 0.0
  %1471 = vmatpush1.msra.mxu0 %v1347
  %1472 = vmatprep.subr.mxu0 0.0
  %1473 = vmatpush1.msra.mxu0 %v1348
  %1474 = vmatprep.subr.mxu0 0.0
  %1475 = vmatpush1.msra.mxu0 %v1349
  %1476 = vmatprep.subr.mxu0 0.0
  %1477 = vmatpush1.msra.mxu0 %v1350
  %1478 = vmatprep.subr.mxu0 0.0
  %1479 = vmatpush1.msra.mxu0 %v1351
  %1480 = vmatprep.subr.mxu0 0.0
  %1481 = vmatpush1.msra.mxu0 %v1352
  %1482 = vmatprep.subr.mxu0 0.0
  %1483 = vmatpush1.msra.mxu0 %v1353
  %1484 = vmatprep.subr.mxu0 0.0
  %1485 = vmatpush1.msra.mxu0 %v1354
  %1486 = vmatprep.subr.mxu0 0.0
  %1487 = vmatpush1.msra.mxu0 %v1355
  %1488 = vmatprep.subr.mxu0 0.0
  %1489 = vmatpush1.msra.mxu0 %v1356
  %1490 = vmatprep.subr.mxu0 0.0
  %1491 = vmatpush1.msra.mxu0 %v1357
  %1492 = vmatprep.subr.mxu0 0.0
  %1493 = vmatpush1.msra.mxu0 %v1358
  %1494 = vmatprep.subr.mxu0 0.0
  %1495 = vmatpush1.msra.mxu0 %v1359
  %1496 = vmatprep.subr.mxu0 0.0
  %1497 = vmatpush1.msra.mxu0 %v1360
  %1498 = vmatprep.subr.mxu0 0.0
  %1499 = vmatpush1.msra.mxu0 %v1361
  %1500 = vmatprep.subr.mxu0 0.0
  %1501 = vmatpush1.msra.mxu0 %v1362
  %1502 = vmatprep.subr.mxu0 0.0
  %1503 = vmatpush1.msra.mxu0 %v1363
  %1504 = vmatprep.subr.mxu0 0.0
  %1505 = vmatpush1.msra.mxu0 %v1364
  %1506 = vmatprep.mubr.f32.mxu0 %v1300
  %1507 = vmatmul.mubr.f32.gmra.mrb[0].mxu0 %v1299
  %v1508 = vpop.f32.mrb[0].mxu0
  %v1509 = vadd.f32 %v1439, %v1508
  %v1510 = vpop.f32.mrb[0].mxu0
  %1511 = vdwg.mxu0
  %1512 = vst [vmem:[%s7] sm:$0xff] %v1509
  // Predicated region
  $region30: #{p3_classifier_forward.3} parent=0 // pred_check
    _
  $region31: #{p3_classifier_forward.3} parent=0 // pred_check_branch
    %1514 = sbr.rel (0) target = $region33
  $region32: #{p3_classifier_forward.3} parent=0 // pred_region
    _
  $region33: #{p3_classifier_forward.3} parent=0 // pred_fallthru
    _
  // Predicated region
  $region34: #{p3_classifier_forward.3} parent=0 // pred_check
    _
  $region35: #{p3_classifier_forward.3} parent=0 // pred_check_branch
    %1516 = sbr.rel (0) target = $region37
  $region36: #{p3_classifier_forward.3} parent=0 // pred_region
    _
  $region37: #{p3_classifier_forward.3} parent=0 // pred_fallthru
    _

</llo_original>
